<compile_context>
chip_gen: v7x
topology: tpu7x:2x2x1
jax: 0.10.0
libtpu: 0.0.40
codegen_flags: <defaults>
</compile_context>

<pallas_src>
import jax
import jax.numpy as jnp
from jax.experimental import pallas as pl
from jax.experimental.pallas import tpu as pltpu

LEAKY_SLOPE = 0.01                       # nn.LeakyReLU default negative_slope
_HIGHEST = jax.lax.Precision.HIGHEST     # only for exact 0/1 selection matmuls


# ---------------------------------------------------------------------------
# In-kernel helpers (channels-first flat (C, H*W) values)
# ---------------------------------------------------------------------------
def _conv_bn_act_flat(x, w_ref, shift_ref, mask_ref, pad_ref, col_ref,
                      K, W, HW, neg_slope):
    """Conv2d(stride1, same, no bias) + folded eval-BN shift + LeakyReLU.

    x:         (Cin, HW) f32 value
    w_ref:     (Cout, K*K*Cin) bf16 weights (BN scale already folded in)
    shift_ref: (Cout, 1) f32 folded BN shift
    mask_ref:  (K, HW) f32 column-validity masks per horizontal tap (None if K==1)
    pad_ref:   (Cin, HW + 2*margin) f32 scratch, margin = p*W + p
    col_ref:   (K*K*Cin, HW) f32 scratch (lane-dense im2col slab)
    returns    (Cout, HW) f32
    """
    Cin = x.shape[0]
    p = (K - 1) // 2
    margin = p * W + p
    # zero only the two tiny halo strips; the interior is fully rewritten below
    if margin > 0:
        pad_ref[:, 0:margin] = jnp.zeros((Cin, margin), jnp.float32)
        pad_ref[:, margin + HW:margin + HW + margin] = jnp.zeros(
            (Cin, margin), jnp.float32)
    pad_ref[:, margin:margin + HW] = x
    # im2col: K*K contiguous lane-window copies, full-width unmasked stores
    for dy in range(K):
        for dx in range(K):
            t = dy * K + dx
            start = dy * W + dx
            win = pad_ref[:, start:start + HW]
            if dx != p:                          # horizontally shifted taps need
                win = win * mask_ref[dx:dx + 1, :]   # column masking (row wrap)
            col_ref[t * Cin:(t + 1) * Cin, :] = win
    # single MXU matmul: bf16 operands, f32 accumulation, 256-lane-dense output
    y = jnp.dot(w_ref[...], col_ref[...].astype(jnp.bfloat16),
                preferred_element_type=jnp.float32)
    y = y + shift_ref[...]                       # folded BatchNorm shift (eval)
    return jnp.where(y >= 0, y, neg_slope * y)   # LeakyReLU


def _maxpool2_flat(s, sel_ref, W, HW):
    """MaxPool2d(2, 2) on a (C, HW) channels-first flat value.

    Two contiguous-shift maxes build all 2x2 window maxima; an exact 0/1
    selection matmul compacts the even-(h,w) corners to (C, HW//4).
    """
    a = jnp.maximum(s[:, :HW - W], s[:, W:])          # vertical pair max
    b = jnp.maximum(a[:, :HW - W - 1], a[:, 1:])      # + horizontal pair max
    return jnp.dot(b, sel_ref[...], preferred_element_type=jnp.float32,
                   precision=_HIGHEST)


# ---------------------------------------------------------------------------
# Fused whole-decoder kernel (generated from the static block configuration)
# ---------------------------------------------------------------------------
def _build_decoder_kernel(cfgs, n_w):
    def kernel(*refs):
        x_ref = refs[0]
        w_refs = refs[1:1 + n_w]
        o_ref = refs[1 + n_w]
        s_refs = refs[2 + n_w:]

        wi = 0
        si = 0
        x = x_ref[0]                               # (C0, H0*W0) f32, lane-dense
        for c in cfgs:
            K, W, HW = c["K"], c["W"], c["HW"]

            if K > 1:
                mask = w_refs[wi]
                wi += 1
            else:
                mask = None

            # first conv of the block (c_in -> c_out)
            w0, sh0 = w_refs[wi], w_refs[wi + 1]
            wi += 2
            pad0, col0 = s_refs[si], s_refs[si + 1]
            si += 2
            hact = _conv_bn_act_flat(x, w0, sh0, mask, pad0, col0,
                                     K, W, HW, LEAKY_SLOPE)

            # shared conv module applied (n_layers - 1) times (shared weights,
            # matching the torch code which re-adds the same module instance)
            if c["n_layers"] > 1:
                w1, sh1 = w_refs[wi], w_refs[wi + 1]
                wi += 2
                pad1, col1 = s_refs[si], s_refs[si + 1]
                si += 2
                for _ in range(1, c["n_layers"]):
                    hact = _conv_bn_act_flat(hact, w1, sh1, mask, pad1, col1,
                                             K, W, HW, LEAKY_SLOPE)

            # skip path: 1x1 conv (with bias) iff channel count changes
            if c["has_skip"]:
                wsk, bsk = w_refs[wi], w_refs[wi + 1]
                wi += 2
                skip = jnp.dot(wsk[...], x.astype(jnp.bfloat16),
                               preferred_element_type=jnp.float32) + bsk[...]
            else:
                skip = x

            # fused residual add + optional 2x2 max-pool (block epilogue)
            s = skip + hact
            if c["do_scale"]:
                sel = w_refs[wi]
                wi += 1
                x = _maxpool2_flat(s, sel, W, HW)
            else:
                x = s

        o_ref[0] = x.astype(o_ref.dtype)

    return kernel


# ---------------------------------------------------------------------------
# Wrapper: build the single fused pallas_call from the parameter pytree
# ---------------------------------------------------------------------------
def decoder_forward(x_nchw, params, block_sizes, use_scales):
    """x_nchw: (N, C, H, W).  Returns the decoder output in NCHW."""
    N, C0, H0, W0 = x_nchw.shape
    x = x_nchw.reshape(N, C0, H0 * W0).astype(jnp.float32)   # free, lane-dense

    inputs = [x]
    in_specs = [pl.BlockSpec((1, C0, H0 * W0), lambda n: (n, 0, 0))]
    scratch_shapes = []
    cfgs = []
    vmem_bytes = 2 * C0 * H0 * W0 * 4            # double-buffered input block

    def add_weight(arr):
        nonlocal vmem_bytes
        inputs.append(arr)
        in_specs.append(pl.BlockSpec(arr.shape, lambda n, nd=arr.ndim: (0,) * nd))
        vmem_bytes += 2 * arr.size * arr.dtype.itemsize

    def add_scratch(shape):
        nonlocal vmem_bytes
        scratch_shapes.append(pltpu.VMEM(shape, jnp.float32))
        sz = 1
        for d in shape:
            sz *= d
        vmem_bytes += sz * 4

    def prep_conv_weight(w_hwio, scale):
        k, _, ci, co = w_hwio.shape
        wf = w_hwio * scale.reshape(1, 1, 1, co)             # fold BN scale
        return jnp.transpose(wf.reshape(k * k * ci, co)).astype(jnp.bfloat16)

    h, w = H0, W0
    for prm, n_layers, do_scale in zip(params, block_sizes, use_scales):
        K, _, c_in, c_out = prm["w0"].shape
        kp = (K - 1) // 2
        hw = h * w
        margin = kp * w + kp
        has_skip = prm["wskip"] is not None
        cfgs.append(dict(K=K, W=w, HW=hw, n_layers=n_layers,
                         do_scale=do_scale, has_skip=has_skip))

        if K > 1:
            # column-validity masks for the horizontally shifted im2col taps
            col = jnp.arange(hw, dtype=jnp.int32) % w
            mask = jnp.stack(
                [((col + (dx - kp) >= 0) & (col + (dx - kp) < w)).astype(jnp.float32)
                 for dx in range(K)], axis=0)
            add_weight(mask)

        add_weight(prep_conv_weight(prm["w0"], prm["scale0"]))
        add_weight(prm["shift0"].reshape(c_out, 1))
        add_scratch((c_in, hw + 2 * margin))
        add_scratch((K * K * c_in, hw))
        if n_layers > 1:
            add_weight(prep_conv_weight(prm["w1"], prm["scale1"]))
            add_weight(prm["shift1"].reshape(c_out, 1))
            add_scratch((c_out, hw + 2 * margin))
            add_scratch((K * K * c_out, hw))
        if has_skip:
            add_weight(jnp.transpose(prm["wskip"].reshape(c_in, c_out))
                       .astype(jnp.bfloat16))
            add_weight(prm["bskip"].reshape(c_out, 1))
        if do_scale:
            assert h % 2 == 0 and w % 2 == 0, "MaxPool2d(2) needs even H, W"
            n_out = (h // 2) * (w // 2)
            rows = hw - w - 1
            j = jnp.arange(n_out, dtype=jnp.int32)
            src = 2 * (j // (w // 2)) * w + 2 * (j % (w // 2))
            sel = (jnp.arange(rows, dtype=jnp.int32)[:, None] == src[None, :]
                   ).astype(jnp.float32)
            add_weight(sel)
            h, w = h // 2, w // 2

    hw_f = h * w
    c_f = params[-1]["w0"].shape[-1]
    vmem_bytes += 2 * c_f * hw_f * 4
    vmem_limit = int(min(max(vmem_bytes + (8 << 20), 16 << 20), 64 << 20))

    n_w = len(inputs) - 1
    kernel = _build_decoder_kernel(cfgs, n_w)
    y = pl.pallas_call(
        kernel,
        out_shape=jax.ShapeDtypeStruct((N, c_f, hw_f), jnp.float32),
        grid=(N,),
        in_specs=in_specs,
        out_specs=pl.BlockSpec((1, c_f, hw_f), lambda n: (n, 0, 0)),
        scratch_shapes=scratch_shapes,
        compiler_params=pltpu.CompilerParams(
            dimension_semantics=("parallel",),
            vmem_limit_bytes=vmem_limit),
    )(*inputs)
    return y.reshape(N, c_f, h, w)                          # NCHW


# ---------------------------------------------------------------------------
# Parameters (deterministic synthetic init, eval-mode BN folded to scale/shift)
# ---------------------------------------------------------------------------
def _fold_bn(gamma, beta, mean, var, eps=1e-5):
    scale = gamma / jnp.sqrt(var + eps)
    shift = beta - mean * scale
    return scale, shift


def init_decoder_params(key, hidden_sizes, kernel_sizes, block_sizes, num_blocks):
    params = []
    for b in range(num_blocks):
        c_in, c_out, K = hidden_sizes[b], hidden_sizes[b + 1], kernel_sizes[b]
        n_layers = block_sizes[b]
        key, *ks = jax.random.split(key, 14)
        p = {}
        p["w0"] = 0.2 * jax.random.normal(ks[0], (K, K, c_in, c_out), jnp.float32)
        p["scale0"], p["shift0"] = _fold_bn(
            1.0 + 0.1 * jax.random.normal(ks[1], (c_out,)),
            0.1 * jax.random.normal(ks[2], (c_out,)),
            0.05 * jax.random.normal(ks[3], (c_out,)),
            1.0 + 0.1 * jnp.abs(jax.random.normal(ks[4], (c_out,))),
        )
        if n_layers > 1:
            p["w1"] = 0.2 * jax.random.normal(ks[5], (K, K, c_out, c_out), jnp.float32)
            p["scale1"], p["shift1"] = _fold_bn(
                1.0 + 0.1 * jax.random.normal(ks[6], (c_out,)),
                0.1 * jax.random.normal(ks[7], (c_out,)),
                0.05 * jax.random.normal(ks[8], (c_out,)),
                1.0 + 0.1 * jnp.abs(jax.random.normal(ks[9], (c_out,))),
            )
        else:
            p["w1"] = p["scale1"] = p["shift1"] = None
        if c_in != c_out:
            p["wskip"] = 0.2 * jax.random.normal(ks[10], (1, 1, c_in, c_out), jnp.float32)
            p["bskip"] = 0.1 * jax.random.normal(ks[11], (c_out,), jnp.float32)
        else:
            p["wskip"] = p["bskip"] = None
        params.append(p)
    return params


# ---------------------------------------------------------------------------
# Pure-JAX reference (same bf16-weight / f32-accumulate numerics as the kernel)
# ---------------------------------------------------------------------------
def _conv_bn_act_ref(x_nhwc, w_hwio, scale, shift, neg_slope):
    co = w_hwio.shape[-1]
    wq = (w_hwio * scale.reshape(1, 1, 1, co)).astype(jnp.bfloat16)
    y = jax.lax.conv_general_dilated(
        x_nhwc.astype(jnp.bfloat16), wq, window_strides=(1, 1), padding="SAME",
        dimension_numbers=("NHWC", "HWIO", "NHWC"),
        preferred_element_type=jnp.float32)
    y = y + shift.reshape(1, 1, 1, co)
    return jnp.where(y >= 0, y, neg_slope * y)


def decoder_reference(x_nchw, params, block_sizes, use_scales):
    x = jnp.transpose(x_nchw, (0, 2, 3, 1)).astype(jnp.float32)   # NHWC
    for p, n_layers, do_scale in zip(params, block_sizes, use_scales):
        h = _conv_bn_act_ref(x, p["w0"], p["scale0"], p["shift0"], LEAKY_SLOPE)
        for _ in range(1, n_layers):
            h = _conv_bn_act_ref(h, p["w1"], p["scale1"], p["shift1"], LEAKY_SLOPE)
        if p["wskip"] is not None:
            co = p["wskip"].shape[-1]
            skip = jax.lax.conv_general_dilated(
                x.astype(jnp.bfloat16), p["wskip"].astype(jnp.bfloat16),
                window_strides=(1, 1), padding="SAME",
                dimension_numbers=("NHWC", "HWIO", "NHWC"),
                preferred_element_type=jnp.float32) + p["bskip"].reshape(1, 1, 1, co)
        else:
            skip = x
        s = skip + h
        if do_scale:
            n_, h_, w_, c_ = s.shape
            s = s.reshape(n_, h_ // 2, 2, w_ // 2, 2, c_).max(axis=(2, 4))
        x = s
    return x   # NHWC


# ---------------------------------------------------------------------------
if __name__ == "__main__":
    # Decoder config (small, consistent with the module's __init__ signature)
    num_blocks = 2
    hidden_sizes = [4, 8, 8]      # block 0: 4 -> 8 (1x1 skip conv), block 1: identity skip
    kernel_sizes = [3, 3]
    block_sizes = [2, 1]          # n_layers per block (block 0 reuses its shared conv once)
    use_scales = [True, False]    # block 0 pools 16x16 -> 8x8

    N, H, W = 2, 16, 16
    key = jax.random.PRNGKey(0)
    key, xkey, pkey = jax.random.split(key, 3)
    x_nchw = jax.random.normal(xkey, (N, hidden_sizes[0], H, W), jnp.float32)

    params = init_decoder_params(pkey, hidden_sizes, kernel_sizes,
                                 block_sizes, num_blocks)

    out = decoder_forward(x_nchw, params, block_sizes, use_scales)
    out = jax.block_until_ready(out)

    ref = jnp.transpose(decoder_reference(x_nchw, params, block_sizes, use_scales),
                        (0, 3, 1, 2))
    ref = jax.block_until_ready(ref)

    assert out.shape == (N, hidden_sizes[-1], 8, 8), out.shape
    max_err = float(jnp.max(jnp.abs(out - ref)))
    assert max_err < 2e-3, f"mismatch vs reference: {max_err}"
    print("KERNEL_OK")
</pallas_src>

<mosaic_0001>
module attributes {stable_mosaic.version = 11 : i64} {
  func.func @kernel(%arg0: i32, %arg1: memref<1x4x256xf32, #tpu.memory_space<vmem>>, %arg2: memref<3x256xf32, #tpu.memory_space<vmem>>, %arg3: memref<8x36xbf16, #tpu.memory_space<vmem>>, %arg4: memref<8x1xf32, #tpu.memory_space<vmem>>, %arg5: memref<8x72xbf16, #tpu.memory_space<vmem>>, %arg6: memref<8x1xf32, #tpu.memory_space<vmem>>, %arg7: memref<8x4xbf16, #tpu.memory_space<vmem>>, %arg8: memref<8x1xf32, #tpu.memory_space<vmem>>, %arg9: memref<239x64xf32, #tpu.memory_space<vmem>>, %arg10: memref<3x64xf32, #tpu.memory_space<vmem>>, %arg11: memref<8x72xbf16, #tpu.memory_space<vmem>>, %arg12: memref<8x1xf32, #tpu.memory_space<vmem>>, %arg13: memref<1x8x64xf32, #tpu.memory_space<vmem>>, %arg14: memref<4x290xf32, #tpu.memory_space<vmem>>, %arg15: memref<36x256xf32, #tpu.memory_space<vmem>>, %arg16: memref<8x290xf32, #tpu.memory_space<vmem>>, %arg17: memref<72x256xf32, #tpu.memory_space<vmem>>, %arg18: memref<8x82xf32, #tpu.memory_space<vmem>>, %arg19: memref<72x64xf32, #tpu.memory_space<vmem>>) attributes {dimension_semantics = [#tpu.dimension_semantics<parallel>], iteration_bounds = array<i64: 2>, scalar_prefetch = 0 : i64, scratch_operands = 6 : i64, tpu.core_type = #tpu.core_type<tc>, window_params = [{transform_indices = @transform_0, window_bounds = array<i64: 1, 4, 256>}, {pipeline_mode = #tpu.pipeline_mode<synchronous>, transform_indices = @transform_1, window_bounds = array<i64: 3, 256>}, {pipeline_mode = #tpu.pipeline_mode<synchronous>, transform_indices = @transform_2, window_bounds = array<i64: 8, 36>}, {pipeline_mode = #tpu.pipeline_mode<synchronous>, transform_indices = @transform_3, window_bounds = array<i64: 8, 1>}, {pipeline_mode = #tpu.pipeline_mode<synchronous>, transform_indices = @transform_4, window_bounds = array<i64: 8, 72>}, {pipeline_mode = #tpu.pipeline_mode<synchronous>, transform_indices = @transform_5, window_bounds = array<i64: 8, 1>}, {pipeline_mode = #tpu.pipeline_mode<synchronous>, transform_indices = @transform_6, window_bounds = array<i64: 8, 4>}, {pipeline_mode = #tpu.pipeline_mode<synchronous>, transform_indices = @transform_7, window_bounds = array<i64: 8, 1>}, {pipeline_mode = #tpu.pipeline_mode<synchronous>, transform_indices = @transform_8, window_bounds = array<i64: 239, 64>}, {pipeline_mode = #tpu.pipeline_mode<synchronous>, transform_indices = @transform_9, window_bounds = array<i64: 3, 64>}, {pipeline_mode = #tpu.pipeline_mode<synchronous>, transform_indices = @transform_10, window_bounds = array<i64: 8, 72>}, {pipeline_mode = #tpu.pipeline_mode<synchronous>, transform_indices = @transform_11, window_bounds = array<i64: 8, 1>}, {transform_indices = @transform_12, window_bounds = array<i64: 1, 8, 64>}]} {
    %c0 = arith.constant 0 : index
    %c0_0 = arith.constant 0 : index
    %c0_1 = arith.constant 0 : index
    %0 = vector.load %arg1[%c0, %c0_0, %c0_1] : memref<1x4x256xf32, #tpu.memory_space<vmem>>, vector<1x4x256xf32>
    %1 = vector.shape_cast %0 : vector<1x4x256xf32> to vector<4x256xf32>
    %cst = arith.constant 0.000000e+00 : f32
    %2 = vector.broadcast %cst : f32 to vector<4x17xf32>
    %c0_2 = arith.constant 0 : index
    %c0_3 = arith.constant 0 : index
    %3 = vector.load %arg14[%c0_2, %c0_3] : memref<4x290xf32, #tpu.memory_space<vmem>>, vector<4x17xf32>
    tpu.vector_store %arg14[%c0_2, %c0_3], %2 {strides = array<i32>} : memref<4x290xf32, #tpu.memory_space<vmem>>, vector<4x17xf32>,
    %cst_4 = arith.constant 0.000000e+00 : f32
    %4 = vector.broadcast %cst_4 : f32 to vector<4x17xf32>
    %c0_5 = arith.constant 0 : index
    %c273 = arith.constant 273 : index
    %5 = vector.load %arg14[%c0_5, %c273] : memref<4x290xf32, #tpu.memory_space<vmem>>, vector<4x17xf32>
    tpu.vector_store %arg14[%c0_5, %c273], %4 {strides = array<i32>} : memref<4x290xf32, #tpu.memory_space<vmem>>, vector<4x17xf32>,
    %c0_6 = arith.constant 0 : index
    %c17 = arith.constant 17 : index
    %6 = vector.load %arg14[%c0_6, %c17] : memref<4x290xf32, #tpu.memory_space<vmem>>, vector<4x256xf32>
    tpu.vector_store %arg14[%c0_6, %c17], %1 {strides = array<i32>} : memref<4x290xf32, #tpu.memory_space<vmem>>, vector<4x256xf32>,
    %c0_7 = arith.constant 0 : index
    %c0_8 = arith.constant 0 : index
    %7 = vector.load %arg14[%c0_7, %c0_8] : memref<4x290xf32, #tpu.memory_space<vmem>>, vector<4x256xf32>
    %c0_9 = arith.constant 0 : index
    %c0_10 = arith.constant 0 : index
    %8 = vector.load %arg2[%c0_9, %c0_10] : memref<3x256xf32, #tpu.memory_space<vmem>>, vector<1x256xf32>
    %9 = vector.broadcast %8 : vector<1x256xf32> to vector<4x256xf32>
    %10 = arith.mulf %7, %9 : vector<4x256xf32>
    %c0_11 = arith.constant 0 : index
    %c0_12 = arith.constant 0 : index
    %11 = vector.load %arg15[%c0_11, %c0_12] : memref<36x256xf32, #tpu.memory_space<vmem>>, vector<4x256xf32>
    tpu.vector_store %arg15[%c0_11, %c0_12], %10 {strides = array<i32>} : memref<36x256xf32, #tpu.memory_space<vmem>>, vector<4x256xf32>,
    %c0_13 = arith.constant 0 : index
    %c1 = arith.constant 1 : index
    %12 = vector.load %arg14[%c0_13, %c1] : memref<4x290xf32, #tpu.memory_space<vmem>>, vector<4x256xf32>
    %c4 = arith.constant 4 : index
    %c0_14 = arith.constant 0 : index
    %13 = vector.load %arg15[%c4, %c0_14] : memref<36x256xf32, #tpu.memory_space<vmem>>, vector<4x256xf32>
    tpu.vector_store %arg15[%c4, %c0_14], %12 {strides = array<i32>} : memref<36x256xf32, #tpu.memory_space<vmem>>, vector<4x256xf32>,
    %c0_15 = arith.constant 0 : index
    %c2 = arith.constant 2 : index
    %14 = vector.load %arg14[%c0_15, %c2] : memref<4x290xf32, #tpu.memory_space<vmem>>, vector<4x256xf32>
    %c2_16 = arith.constant 2 : index
    %c0_17 = arith.constant 0 : index
    %15 = vector.load %arg2[%c2_16, %c0_17] : memref<3x256xf32, #tpu.memory_space<vmem>>, vector<1x256xf32>
    %16 = vector.broadcast %15 : vector<1x256xf32> to vector<4x256xf32>
    %17 = arith.mulf %14, %16 : vector<4x256xf32>
    %c8 = arith.constant 8 : index
    %c0_18 = arith.constant 0 : index
    %18 = vector.load %arg15[%c8, %c0_18] : memref<36x256xf32, #tpu.memory_space<vmem>>, vector<4x256xf32>
    tpu.vector_store %arg15[%c8, %c0_18], %17 {strides = array<i32>} : memref<36x256xf32, #tpu.memory_space<vmem>>, vector<4x256xf32>,
    %c0_19 = arith.constant 0 : index
    %c16 = arith.constant 16 : index
    %19 = vector.load %arg14[%c0_19, %c16] : memref<4x290xf32, #tpu.memory_space<vmem>>, vector<4x256xf32>
    %c0_20 = arith.constant 0 : index
    %c0_21 = arith.constant 0 : index
    %20 = vector.load %arg2[%c0_20, %c0_21] : memref<3x256xf32, #tpu.memory_space<vmem>>, vector<1x256xf32>
    %21 = vector.broadcast %20 : vector<1x256xf32> to vector<4x256xf32>
    %22 = arith.mulf %19, %21 : vector<4x256xf32>
    %c12 = arith.constant 12 : index
    %c0_22 = arith.constant 0 : index
    %23 = vector.load %arg15[%c12, %c0_22] : memref<36x256xf32, #tpu.memory_space<vmem>>, vector<4x256xf32>
    tpu.vector_store %arg15[%c12, %c0_22], %22 {strides = array<i32>} : memref<36x256xf32, #tpu.memory_space<vmem>>, vector<4x256xf32>,
    %c0_23 = arith.constant 0 : index
    %c17_24 = arith.constant 17 : index
    %24 = vector.load %arg14[%c0_23, %c17_24] : memref<4x290xf32, #tpu.memory_space<vmem>>, vector<4x256xf32>
    %c16_25 = arith.constant 16 : index
    %c0_26 = arith.constant 0 : index
    %25 = vector.load %arg15[%c16_25, %c0_26] : memref<36x256xf32, #tpu.memory_space<vmem>>, vector<4x256xf32>
    tpu.vector_store %arg15[%c16_25, %c0_26], %24 {strides = array<i32>} : memref<36x256xf32, #tpu.memory_space<vmem>>, vector<4x256xf32>,
    %c0_27 = arith.constant 0 : index
    %c18 = arith.constant 18 : index
    %26 = vector.load %arg14[%c0_27, %c18] : memref<4x290xf32, #tpu.memory_space<vmem>>, vector<4x256xf32>
    %c2_28 = arith.constant 2 : index
    %c0_29 = arith.constant 0 : index
    %27 = vector.load %arg2[%c2_28, %c0_29] : memref<3x256xf32, #tpu.memory_space<vmem>>, vector<1x256xf32>
    %28 = vector.broadcast %27 : vector<1x256xf32> to vector<4x256xf32>
    %29 = arith.mulf %26, %28 : vector<4x256xf32>
    %c20 = arith.constant 20 : index
    %c0_30 = arith.constant 0 : index
    %30 = vector.load %arg15[%c20, %c0_30] : memref<36x256xf32, #tpu.memory_space<vmem>>, vector<4x256xf32>
    tpu.vector_store %arg15[%c20, %c0_30], %29 {strides = array<i32>} : memref<36x256xf32, #tpu.memory_space<vmem>>, vector<4x256xf32>,
    %c0_31 = arith.constant 0 : index
    %c32 = arith.constant 32 : index
    %31 = vector.load %arg14[%c0_31, %c32] : memref<4x290xf32, #tpu.memory_space<vmem>>, vector<4x256xf32>
    %c0_32 = arith.constant 0 : index
    %c0_33 = arith.constant 0 : index
    %32 = vector.load %arg2[%c0_32, %c0_33] : memref<3x256xf32, #tpu.memory_space<vmem>>, vector<1x256xf32>
    %33 = vector.broadcast %32 : vector<1x256xf32> to vector<4x256xf32>
    %34 = arith.mulf %31, %33 : vector<4x256xf32>
    %c24 = arith.constant 24 : index
    %c0_34 = arith.constant 0 : index
    %35 = vector.load %arg15[%c24, %c0_34] : memref<36x256xf32, #tpu.memory_space<vmem>>, vector<4x256xf32>
    tpu.vector_store %arg15[%c24, %c0_34], %34 {strides = array<i32>} : memref<36x256xf32, #tpu.memory_space<vmem>>, vector<4x256xf32>,
    %c0_35 = arith.constant 0 : index
    %c33 = arith.constant 33 : index
    %36 = vector.load %arg14[%c0_35, %c33] : memref<4x290xf32, #tpu.memory_space<vmem>>, vector<4x256xf32>
    %c28 = arith.constant 28 : index
    %c0_36 = arith.constant 0 : index
    %37 = vector.load %arg15[%c28, %c0_36] : memref<36x256xf32, #tpu.memory_space<vmem>>, vector<4x256xf32>
    tpu.vector_store %arg15[%c28, %c0_36], %36 {strides = array<i32>} : memref<36x256xf32, #tpu.memory_space<vmem>>, vector<4x256xf32>,
    %c0_37 = arith.constant 0 : index
    %c34 = arith.constant 34 : index
    %38 = vector.load %arg14[%c0_37, %c34] : memref<4x290xf32, #tpu.memory_space<vmem>>, vector<4x256xf32>
    %c2_38 = arith.constant 2 : index
    %c0_39 = arith.constant 0 : index
    %39 = vector.load %arg2[%c2_38, %c0_39] : memref<3x256xf32, #tpu.memory_space<vmem>>, vector<1x256xf32>
    %40 = vector.broadcast %39 : vector<1x256xf32> to vector<4x256xf32>
    %41 = arith.mulf %38, %40 : vector<4x256xf32>
    %c32_40 = arith.constant 32 : index
    %c0_41 = arith.constant 0 : index
    %42 = vector.load %arg15[%c32_40, %c0_41] : memref<36x256xf32, #tpu.memory_space<vmem>>, vector<4x256xf32>
    tpu.vector_store %arg15[%c32_40, %c0_41], %41 {strides = array<i32>} : memref<36x256xf32, #tpu.memory_space<vmem>>, vector<4x256xf32>,
    %c0_42 = arith.constant 0 : index
    %c0_43 = arith.constant 0 : index
    %43 = vector.load %arg3[%c0_42, %c0_43] : memref<8x36xbf16, #tpu.memory_space<vmem>>, vector<8x36xbf16>
    %c0_44 = arith.constant 0 : index
    %c0_45 = arith.constant 0 : index
    %44 = vector.load %arg15[%c0_44, %c0_45] : memref<36x256xf32, #tpu.memory_space<vmem>>, vector<36x256xf32>
    %45 = arith.truncf %44 : vector<36x256xf32> to vector<36x256xbf16>
    %cst_46 = arith.constant dense<0.000000e+00> : vector<8x256xf32>
    %46 = tpu.matmul %43, %45, %cst_46 {dimension_numbers = #tpu.dot_dimension_numbers<[1], [0], [0], [1], [0, 0, 1, 1], [], []>} : vector<8x36xbf16>, vector<36x256xbf16>, vector<8x256xf32> -> vector<8x256xf32>
    %c0_47 = arith.constant 0 : index
    %c0_48 = arith.constant 0 : index
    %47 = vector.load %arg4[%c0_47, %c0_48] : memref<8x1xf32, #tpu.memory_space<vmem>>, vector<8x1xf32>
    %48 = vector.broadcast %47 : vector<8x1xf32> to vector<8x256xf32>
    %49 = arith.addf %46, %48 : vector<8x256xf32>
    %cst_49 = arith.constant 0.000000e+00 : f32
    %50 = vector.broadcast %cst_49 : f32 to vector<8x256xf32>
    %51 = arith.cmpf oge, %49, %50 : vector<8x256xf32>
    %cst_50 = arith.constant 0.00999999977 : f32
    %52 = vector.broadcast %cst_50 : f32 to vector<8x256xf32>
    %53 = arith.mulf %52, %49 : vector<8x256xf32>
    %54 = arith.select %51, %49, %53 : vector<8x256xi1>, vector<8x256xf32>
    %cst_51 = arith.constant 0.000000e+00 : f32
    %55 = vector.broadcast %cst_51 : f32 to vector<8x17xf32>
    %c0_52 = arith.constant 0 : index
    %c0_53 = arith.constant 0 : index
    %56 = vector.load %arg16[%c0_52, %c0_53] : memref<8x290xf32, #tpu.memory_space<vmem>>, vector<8x17xf32>
    tpu.vector_store %arg16[%c0_52, %c0_53], %55 {strides = array<i32>} : memref<8x290xf32, #tpu.memory_space<vmem>>, vector<8x17xf32>,
    %cst_54 = arith.constant 0.000000e+00 : f32
    %57 = vector.broadcast %cst_54 : f32 to vector<8x17xf32>
    %c0_55 = arith.constant 0 : index
    %c273_56 = arith.constant 273 : index
    %58 = vector.load %arg16[%c0_55, %c273_56] : memref<8x290xf32, #tpu.memory_space<vmem>>, vector<8x17xf32>
    tpu.vector_store %arg16[%c0_55, %c273_56], %57 {strides = array<i32>} : memref<8x290xf32, #tpu.memory_space<vmem>>, vector<8x17xf32>,
    %c0_57 = arith.constant 0 : index
    %c17_58 = arith.constant 17 : index
    %59 = vector.load %arg16[%c0_57, %c17_58] : memref<8x290xf32, #tpu.memory_space<vmem>>, vector<8x256xf32>
    tpu.vector_store %arg16[%c0_57, %c17_58], %54 {strides = array<i32>} : memref<8x290xf32, #tpu.memory_space<vmem>>, vector<8x256xf32>,
    %c0_59 = arith.constant 0 : index
    %c0_60 = arith.constant 0 : index
    %60 = vector.load %arg16[%c0_59, %c0_60] : memref<8x290xf32, #tpu.memory_space<vmem>>, vector<8x256xf32>
    %c0_61 = arith.constant 0 : index
    %c0_62 = arith.constant 0 : index
    %61 = vector.load %arg2[%c0_61, %c0_62] : memref<3x256xf32, #tpu.memory_space<vmem>>, vector<1x256xf32>
    %62 = vector.broadcast %61 : vector<1x256xf32> to vector<8x256xf32>
    %63 = arith.mulf %60, %62 : vector<8x256xf32>
    %c0_63 = arith.constant 0 : index
    %c0_64 = arith.constant 0 : index
    %64 = vector.load %arg17[%c0_63, %c0_64] : memref<72x256xf32, #tpu.memory_space<vmem>>, vector<8x256xf32>
    tpu.vector_store %arg17[%c0_63, %c0_64], %63 {strides = array<i32>} : memref<72x256xf32, #tpu.memory_space<vmem>>, vector<8x256xf32>,
    %c0_65 = arith.constant 0 : index
    %c1_66 = arith.constant 1 : index
    %65 = vector.load %arg16[%c0_65, %c1_66] : memref<8x290xf32, #tpu.memory_space<vmem>>, vector<8x256xf32>
    %c8_67 = arith.constant 8 : index
    %c0_68 = arith.constant 0 : index
    %66 = vector.load %arg17[%c8_67, %c0_68] : memref<72x256xf32, #tpu.memory_space<vmem>>, vector<8x256xf32>
    tpu.vector_store %arg17[%c8_67, %c0_68], %65 {strides = array<i32>} : memref<72x256xf32, #tpu.memory_space<vmem>>, vector<8x256xf32>,
    %c0_69 = arith.constant 0 : index
    %c2_70 = arith.constant 2 : index
    %67 = vector.load %arg16[%c0_69, %c2_70] : memref<8x290xf32, #tpu.memory_space<vmem>>, vector<8x256xf32>
    %c2_71 = arith.constant 2 : index
    %c0_72 = arith.constant 0 : index
    %68 = vector.load %arg2[%c2_71, %c0_72] : memref<3x256xf32, #tpu.memory_space<vmem>>, vector<1x256xf32>
    %69 = vector.broadcast %68 : vector<1x256xf32> to vector<8x256xf32>
    %70 = arith.mulf %67, %69 : vector<8x256xf32>
    %c16_73 = arith.constant 16 : index
    %c0_74 = arith.constant 0 : index
    %71 = vector.load %arg17[%c16_73, %c0_74] : memref<72x256xf32, #tpu.memory_space<vmem>>, vector<8x256xf32>
    tpu.vector_store %arg17[%c16_73, %c0_74], %70 {strides = array<i32>} : memref<72x256xf32, #tpu.memory_space<vmem>>, vector<8x256xf32>,
    %c0_75 = arith.constant 0 : index
    %c16_76 = arith.constant 16 : index
    %72 = vector.load %arg16[%c0_75, %c16_76] : memref<8x290xf32, #tpu.memory_space<vmem>>, vector<8x256xf32>
    %c0_77 = arith.constant 0 : index
    %c0_78 = arith.constant 0 : index
    %73 = vector.load %arg2[%c0_77, %c0_78] : memref<3x256xf32, #tpu.memory_space<vmem>>, vector<1x256xf32>
    %74 = vector.broadcast %73 : vector<1x256xf32> to vector<8x256xf32>
    %75 = arith.mulf %72, %74 : vector<8x256xf32>
    %c24_79 = arith.constant 24 : index
    %c0_80 = arith.constant 0 : index
    %76 = vector.load %arg17[%c24_79, %c0_80] : memref<72x256xf32, #tpu.memory_space<vmem>>, vector<8x256xf32>
    tpu.vector_store %arg17[%c24_79, %c0_80], %75 {strides = array<i32>} : memref<72x256xf32, #tpu.memory_space<vmem>>, vector<8x256xf32>,
    %c0_81 = arith.constant 0 : index
    %c17_82 = arith.constant 17 : index
    %77 = vector.load %arg16[%c0_81, %c17_82] : memref<8x290xf32, #tpu.memory_space<vmem>>, vector<8x256xf32>
    %c32_83 = arith.constant 32 : index
    %c0_84 = arith.constant 0 : index
    %78 = vector.load %arg17[%c32_83, %c0_84] : memref<72x256xf32, #tpu.memory_space<vmem>>, vector<8x256xf32>
    tpu.vector_store %arg17[%c32_83, %c0_84], %77 {strides = array<i32>} : memref<72x256xf32, #tpu.memory_space<vmem>>, vector<8x256xf32>,
    %c0_85 = arith.constant 0 : index
    %c18_86 = arith.constant 18 : index
    %79 = vector.load %arg16[%c0_85, %c18_86] : memref<8x290xf32, #tpu.memory_space<vmem>>, vector<8x256xf32>
    %c2_87 = arith.constant 2 : index
    %c0_88 = arith.constant 0 : index
    %80 = vector.load %arg2[%c2_87, %c0_88] : memref<3x256xf32, #tpu.memory_space<vmem>>, vector<1x256xf32>
    %81 = vector.broadcast %80 : vector<1x256xf32> to vector<8x256xf32>
    %82 = arith.mulf %79, %81 : vector<8x256xf32>
    %c40 = arith.constant 40 : index
    %c0_89 = arith.constant 0 : index
    %83 = vector.load %arg17[%c40, %c0_89] : memref<72x256xf32, #tpu.memory_space<vmem>>, vector<8x256xf32>
    tpu.vector_store %arg17[%c40, %c0_89], %82 {strides = array<i32>} : memref<72x256xf32, #tpu.memory_space<vmem>>, vector<8x256xf32>,
    %c0_90 = arith.constant 0 : index
    %c32_91 = arith.constant 32 : index
    %84 = vector.load %arg16[%c0_90, %c32_91] : memref<8x290xf32, #tpu.memory_space<vmem>>, vector<8x256xf32>
    %c0_92 = arith.constant 0 : index
    %c0_93 = arith.constant 0 : index
    %85 = vector.load %arg2[%c0_92, %c0_93] : memref<3x256xf32, #tpu.memory_space<vmem>>, vector<1x256xf32>
    %86 = vector.broadcast %85 : vector<1x256xf32> to vector<8x256xf32>
    %87 = arith.mulf %84, %86 : vector<8x256xf32>
    %c48 = arith.constant 48 : index
    %c0_94 = arith.constant 0 : index
    %88 = vector.load %arg17[%c48, %c0_94] : memref<72x256xf32, #tpu.memory_space<vmem>>, vector<8x256xf32>
    tpu.vector_store %arg17[%c48, %c0_94], %87 {strides = array<i32>} : memref<72x256xf32, #tpu.memory_space<vmem>>, vector<8x256xf32>,
    %c0_95 = arith.constant 0 : index
    %c33_96 = arith.constant 33 : index
    %89 = vector.load %arg16[%c0_95, %c33_96] : memref<8x290xf32, #tpu.memory_space<vmem>>, vector<8x256xf32>
    %c56 = arith.constant 56 : index
    %c0_97 = arith.constant 0 : index
    %90 = vector.load %arg17[%c56, %c0_97] : memref<72x256xf32, #tpu.memory_space<vmem>>, vector<8x256xf32>
    tpu.vector_store %arg17[%c56, %c0_97], %89 {strides = array<i32>} : memref<72x256xf32, #tpu.memory_space<vmem>>, vector<8x256xf32>,
    %c0_98 = arith.constant 0 : index
    %c34_99 = arith.constant 34 : index
    %91 = vector.load %arg16[%c0_98, %c34_99] : memref<8x290xf32, #tpu.memory_space<vmem>>, vector<8x256xf32>
    %c2_100 = arith.constant 2 : index
    %c0_101 = arith.constant 0 : index
    %92 = vector.load %arg2[%c2_100, %c0_101] : memref<3x256xf32, #tpu.memory_space<vmem>>, vector<1x256xf32>
    %93 = vector.broadcast %92 : vector<1x256xf32> to vector<8x256xf32>
    %94 = arith.mulf %91, %93 : vector<8x256xf32>
    %c64 = arith.constant 64 : index
    %c0_102 = arith.constant 0 : index
    %95 = vector.load %arg17[%c64, %c0_102] : memref<72x256xf32, #tpu.memory_space<vmem>>, vector<8x256xf32>
    tpu.vector_store %arg17[%c64, %c0_102], %94 {strides = array<i32>} : memref<72x256xf32, #tpu.memory_space<vmem>>, vector<8x256xf32>,
    %c0_103 = arith.constant 0 : index
    %c0_104 = arith.constant 0 : index
    %96 = vector.load %arg5[%c0_103, %c0_104] : memref<8x72xbf16, #tpu.memory_space<vmem>>, vector<8x72xbf16>
    %c0_105 = arith.constant 0 : index
    %c0_106 = arith.constant 0 : index
    %97 = vector.load %arg17[%c0_105, %c0_106] : memref<72x256xf32, #tpu.memory_space<vmem>>, vector<72x256xf32>
    %98 = arith.truncf %97 : vector<72x256xf32> to vector<72x256xbf16>
    %cst_107 = arith.constant dense<0.000000e+00> : vector<8x256xf32>
    %99 = tpu.matmul %96, %98, %cst_107 {dimension_numbers = #tpu.dot_dimension_numbers<[1], [0], [0], [1], [0, 0, 1, 1], [], []>} : vector<8x72xbf16>, vector<72x256xbf16>, vector<8x256xf32> -> vector<8x256xf32>
    %c0_108 = arith.constant 0 : index
    %c0_109 = arith.constant 0 : index
    %100 = vector.load %arg6[%c0_108, %c0_109] : memref<8x1xf32, #tpu.memory_space<vmem>>, vector<8x1xf32>
    %101 = vector.broadcast %100 : vector<8x1xf32> to vector<8x256xf32>
    %102 = arith.addf %99, %101 : vector<8x256xf32>
    %cst_110 = arith.constant 0.000000e+00 : f32
    %103 = vector.broadcast %cst_110 : f32 to vector<8x256xf32>
    %104 = arith.cmpf oge, %102, %103 : vector<8x256xf32>
    %cst_111 = arith.constant 0.00999999977 : f32
    %105 = vector.broadcast %cst_111 : f32 to vector<8x256xf32>
    %106 = arith.mulf %105, %102 : vector<8x256xf32>
    %107 = arith.select %104, %102, %106 : vector<8x256xi1>, vector<8x256xf32>
    %c0_112 = arith.constant 0 : index
    %c0_113 = arith.constant 0 : index
    %108 = vector.load %arg7[%c0_112, %c0_113] : memref<8x4xbf16, #tpu.memory_space<vmem>>, vector<8x4xbf16>
    %109 = arith.truncf %1 : vector<4x256xf32> to vector<4x256xbf16>
    %cst_114 = arith.constant dense<0.000000e+00> : vector<8x256xf32>
    %110 = tpu.matmul %108, %109, %cst_114 {dimension_numbers = #tpu.dot_dimension_numbers<[1], [0], [0], [1], [0, 0, 1, 1], [], []>} : vector<8x4xbf16>, vector<4x256xbf16>, vector<8x256xf32> -> vector<8x256xf32>
    %c0_115 = arith.constant 0 : index
    %c0_116 = arith.constant 0 : index
    %111 = vector.load %arg8[%c0_115, %c0_116] : memref<8x1xf32, #tpu.memory_space<vmem>>, vector<8x1xf32>
    %112 = vector.broadcast %111 : vector<8x1xf32> to vector<8x256xf32>
    %113 = arith.addf %110, %112 : vector<8x256xf32>
    %114 = arith.addf %113, %107 : vector<8x256xf32>
    %115 = vector.extract_strided_slice %114 {offsets = [0, 0], sizes = [8, 240], strides = [1, 1]} : vector<8x256xf32> to vector<8x240xf32>
    %116 = vector.extract_strided_slice %114 {offsets = [0, 16], sizes = [8, 240], strides = [1, 1]} : vector<8x256xf32> to vector<8x240xf32>
    %117 = arith.maximumf %115, %116 : vector<8x240xf32>
    %118 = vector.extract_strided_slice %117 {offsets = [0, 0], sizes = [8, 239], strides = [1, 1]} : vector<8x240xf32> to vector<8x239xf32>
    %119 = vector.extract_strided_slice %117 {offsets = [0, 1], sizes = [8, 239], strides = [1, 1]} : vector<8x240xf32> to vector<8x239xf32>
    %120 = arith.maximumf %118, %119 : vector<8x239xf32>
    %c0_117 = arith.constant 0 : index
    %c0_118 = arith.constant 0 : index
    %121 = vector.load %arg9[%c0_117, %c0_118] : memref<239x64xf32, #tpu.memory_space<vmem>>, vector<239x64xf32>
    %cst_119 = arith.constant dense<0.000000e+00> : vector<8x64xf32>
    %122 = tpu.matmul %120, %121, %cst_119 {dimension_numbers = #tpu.dot_dimension_numbers<[1], [0], [0], [1], [0, 0, 1, 1], [], []>, precision = #tpu.contract_precision<fp32>} : vector<8x239xf32>, vector<239x64xf32>, vector<8x64xf32> -> vector<8x64xf32>
    %cst_120 = arith.constant 0.000000e+00 : f32
    %123 = vector.broadcast %cst_120 : f32 to vector<8x9xf32>
    %c0_121 = arith.constant 0 : index
    %c0_122 = arith.constant 0 : index
    %124 = vector.load %arg18[%c0_121, %c0_122] : memref<8x82xf32, #tpu.memory_space<vmem>>, vector<8x9xf32>
    tpu.vector_store %arg18[%c0_121, %c0_122], %123 {strides = array<i32>} : memref<8x82xf32, #tpu.memory_space<vmem>>, vector<8x9xf32>,
    %cst_123 = arith.constant 0.000000e+00 : f32
    %125 = vector.broadcast %cst_123 : f32 to vector<8x9xf32>
    %c0_124 = arith.constant 0 : index
    %c73 = arith.constant 73 : index
    %126 = vector.load %arg18[%c0_124, %c73] : memref<8x82xf32, #tpu.memory_space<vmem>>, vector<8x9xf32>
    tpu.vector_store %arg18[%c0_124, %c73], %125 {strides = array<i32>} : memref<8x82xf32, #tpu.memory_space<vmem>>, vector<8x9xf32>,
    %c0_125 = arith.constant 0 : index
    %c9 = arith.constant 9 : index
    %127 = vector.load %arg18[%c0_125, %c9] : memref<8x82xf32, #tpu.memory_space<vmem>>, vector<8x64xf32>
    tpu.vector_store %arg18[%c0_125, %c9], %122 {strides = array<i32>} : memref<8x82xf32, #tpu.memory_space<vmem>>, vector<8x64xf32>,
    %c0_126 = arith.constant 0 : index
    %c0_127 = arith.constant 0 : index
    %128 = vector.load %arg18[%c0_126, %c0_127] : memref<8x82xf32, #tpu.memory_space<vmem>>, vector<8x64xf32>
    %c0_128 = arith.constant 0 : index
    %c0_129 = arith.constant 0 : index
    %129 = vector.load %arg10[%c0_128, %c0_129] : memref<3x64xf32, #tpu.memory_space<vmem>>, vector<1x64xf32>
    %130 = vector.broadcast %129 : vector<1x64xf32> to vector<8x64xf32>
    %131 = arith.mulf %128, %130 : vector<8x64xf32>
    %c0_130 = arith.constant 0 : index
    %c0_131 = arith.constant 0 : index
    %132 = vector.load %arg19[%c0_130, %c0_131] : memref<72x64xf32, #tpu.memory_space<vmem>>, vector<8x64xf32>
    tpu.vector_store %arg19[%c0_130, %c0_131], %131 {strides = array<i32>} : memref<72x64xf32, #tpu.memory_space<vmem>>, vector<8x64xf32>,
    %c0_132 = arith.constant 0 : index
    %c1_133 = arith.constant 1 : index
    %133 = vector.load %arg18[%c0_132, %c1_133] : memref<8x82xf32, #tpu.memory_space<vmem>>, vector<8x64xf32>
    %c8_134 = arith.constant 8 : index
    %c0_135 = arith.constant 0 : index
    %134 = vector.load %arg19[%c8_134, %c0_135] : memref<72x64xf32, #tpu.memory_space<vmem>>, vector<8x64xf32>
    tpu.vector_store %arg19[%c8_134, %c0_135], %133 {strides = array<i32>} : memref<72x64xf32, #tpu.memory_space<vmem>>, vector<8x64xf32>,
    %c0_136 = arith.constant 0 : index
    %c2_137 = arith.constant 2 : index
    %135 = vector.load %arg18[%c0_136, %c2_137] : memref<8x82xf32, #tpu.memory_space<vmem>>, vector<8x64xf32>
    %c2_138 = arith.constant 2 : index
    %c0_139 = arith.constant 0 : index
    %136 = vector.load %arg10[%c2_138, %c0_139] : memref<3x64xf32, #tpu.memory_space<vmem>>, vector<1x64xf32>
    %137 = vector.broadcast %136 : vector<1x64xf32> to vector<8x64xf32>
    %138 = arith.mulf %135, %137 : vector<8x64xf32>
    %c16_140 = arith.constant 16 : index
    %c0_141 = arith.constant 0 : index
    %139 = vector.load %arg19[%c16_140, %c0_141] : memref<72x64xf32, #tpu.memory_space<vmem>>, vector<8x64xf32>
    tpu.vector_store %arg19[%c16_140, %c0_141], %138 {strides = array<i32>} : memref<72x64xf32, #tpu.memory_space<vmem>>, vector<8x64xf32>,
    %c0_142 = arith.constant 0 : index
    %c8_143 = arith.constant 8 : index
    %140 = vector.load %arg18[%c0_142, %c8_143] : memref<8x82xf32, #tpu.memory_space<vmem>>, vector<8x64xf32>
    %c0_144 = arith.constant 0 : index
    %c0_145 = arith.constant 0 : index
    %141 = vector.load %arg10[%c0_144, %c0_145] : memref<3x64xf32, #tpu.memory_space<vmem>>, vector<1x64xf32>
    %142 = vector.broadcast %141 : vector<1x64xf32> to vector<8x64xf32>
    %143 = arith.mulf %140, %142 : vector<8x64xf32>
    %c24_146 = arith.constant 24 : index
    %c0_147 = arith.constant 0 : index
    %144 = vector.load %arg19[%c24_146, %c0_147] : memref<72x64xf32, #tpu.memory_space<vmem>>, vector<8x64xf32>
    tpu.vector_store %arg19[%c24_146, %c0_147], %143 {strides = array<i32>} : memref<72x64xf32, #tpu.memory_space<vmem>>, vector<8x64xf32>,
    %c0_148 = arith.constant 0 : index
    %c9_149 = arith.constant 9 : index
    %145 = vector.load %arg18[%c0_148, %c9_149] : memref<8x82xf32, #tpu.memory_space<vmem>>, vector<8x64xf32>
    %c32_150 = arith.constant 32 : index
    %c0_151 = arith.constant 0 : index
    %146 = vector.load %arg19[%c32_150, %c0_151] : memref<72x64xf32, #tpu.memory_space<vmem>>, vector<8x64xf32>
    tpu.vector_store %arg19[%c32_150, %c0_151], %145 {strides = array<i32>} : memref<72x64xf32, #tpu.memory_space<vmem>>, vector<8x64xf32>,
    %c0_152 = arith.constant 0 : index
    %c10 = arith.constant 10 : index
    %147 = vector.load %arg18[%c0_152, %c10] : memref<8x82xf32, #tpu.memory_space<vmem>>, vector<8x64xf32>
    %c2_153 = arith.constant 2 : index
    %c0_154 = arith.constant 0 : index
    %148 = vector.load %arg10[%c2_153, %c0_154] : memref<3x64xf32, #tpu.memory_space<vmem>>, vector<1x64xf32>
    %149 = vector.broadcast %148 : vector<1x64xf32> to vector<8x64xf32>
    %150 = arith.mulf %147, %149 : vector<8x64xf32>
    %c40_155 = arith.constant 40 : index
    %c0_156 = arith.constant 0 : index
    %151 = vector.load %arg19[%c40_155, %c0_156] : memref<72x64xf32, #tpu.memory_space<vmem>>, vector<8x64xf32>
    tpu.vector_store %arg19[%c40_155, %c0_156], %150 {strides = array<i32>} : memref<72x64xf32, #tpu.memory_space<vmem>>, vector<8x64xf32>,
    %c0_157 = arith.constant 0 : index
    %c16_158 = arith.constant 16 : index
    %152 = vector.load %arg18[%c0_157, %c16_158] : memref<8x82xf32, #tpu.memory_space<vmem>>, vector<8x64xf32>
    %c0_159 = arith.constant 0 : index
    %c0_160 = arith.constant 0 : index
    %153 = vector.load %arg10[%c0_159, %c0_160] : memref<3x64xf32, #tpu.memory_space<vmem>>, vector<1x64xf32>
    %154 = vector.broadcast %153 : vector<1x64xf32> to vector<8x64xf32>
    %155 = arith.mulf %152, %154 : vector<8x64xf32>
    %c48_161 = arith.constant 48 : index
    %c0_162 = arith.constant 0 : index
    %156 = vector.load %arg19[%c48_161, %c0_162] : memref<72x64xf32, #tpu.memory_space<vmem>>, vector<8x64xf32>
    tpu.vector_store %arg19[%c48_161, %c0_162], %155 {strides = array<i32>} : memref<72x64xf32, #tpu.memory_space<vmem>>, vector<8x64xf32>,
    %c0_163 = arith.constant 0 : index
    %c17_164 = arith.constant 17 : index
    %157 = vector.load %arg18[%c0_163, %c17_164] : memref<8x82xf32, #tpu.memory_space<vmem>>, vector<8x64xf32>
    %c56_165 = arith.constant 56 : index
    %c0_166 = arith.constant 0 : index
    %158 = vector.load %arg19[%c56_165, %c0_166] : memref<72x64xf32, #tpu.memory_space<vmem>>, vector<8x64xf32>
    tpu.vector_store %arg19[%c56_165, %c0_166], %157 {strides = array<i32>} : memref<72x64xf32, #tpu.memory_space<vmem>>, vector<8x64xf32>,
    %c0_167 = arith.constant 0 : index
    %c18_168 = arith.constant 18 : index
    %159 = vector.load %arg18[%c0_167, %c18_168] : memref<8x82xf32, #tpu.memory_space<vmem>>, vector<8x64xf32>
    %c2_169 = arith.constant 2 : index
    %c0_170 = arith.constant 0 : index
    %160 = vector.load %arg10[%c2_169, %c0_170] : memref<3x64xf32, #tpu.memory_space<vmem>>, vector<1x64xf32>
    %161 = vector.broadcast %160 : vector<1x64xf32> to vector<8x64xf32>
    %162 = arith.mulf %159, %161 : vector<8x64xf32>
    %c64_171 = arith.constant 64 : index
    %c0_172 = arith.constant 0 : index
    %163 = vector.load %arg19[%c64_171, %c0_172] : memref<72x64xf32, #tpu.memory_space<vmem>>, vector<8x64xf32>
    tpu.vector_store %arg19[%c64_171, %c0_172], %162 {strides = array<i32>} : memref<72x64xf32, #tpu.memory_space<vmem>>, vector<8x64xf32>,
    %c0_173 = arith.constant 0 : index
    %c0_174 = arith.constant 0 : index
    %164 = vector.load %arg11[%c0_173, %c0_174] : memref<8x72xbf16, #tpu.memory_space<vmem>>, vector<8x72xbf16>
    %c0_175 = arith.constant 0 : index
    %c0_176 = arith.constant 0 : index
    %165 = vector.load %arg19[%c0_175, %c0_176] : memref<72x64xf32, #tpu.memory_space<vmem>>, vector<72x64xf32>
    %166 = arith.truncf %165 : vector<72x64xf32> to vector<72x64xbf16>
    %cst_177 = arith.constant dense<0.000000e+00> : vector<8x64xf32>
    %167 = tpu.matmul %164, %166, %cst_177 {dimension_numbers = #tpu.dot_dimension_numbers<[1], [0], [0], [1], [0, 0, 1, 1], [], []>} : vector<8x72xbf16>, vector<72x64xbf16>, vector<8x64xf32> -> vector<8x64xf32>
    %c0_178 = arith.constant 0 : index
    %c0_179 = arith.constant 0 : index
    %168 = vector.load %arg12[%c0_178, %c0_179] : memref<8x1xf32, #tpu.memory_space<vmem>>, vector<8x1xf32>
    %169 = vector.broadcast %168 : vector<8x1xf32> to vector<8x64xf32>
    %170 = arith.addf %167, %169 : vector<8x64xf32>
    %cst_180 = arith.constant 0.000000e+00 : f32
    %171 = vector.broadcast %cst_180 : f32 to vector<8x64xf32>
    %172 = arith.cmpf oge, %170, %171 : vector<8x64xf32>
    %cst_181 = arith.constant 0.00999999977 : f32
    %173 = vector.broadcast %cst_181 : f32 to vector<8x64xf32>
    %174 = arith.mulf %173, %170 : vector<8x64xf32>
    %175 = arith.select %172, %170, %174 : vector<8x64xi1>, vector<8x64xf32>
    %176 = arith.addf %122, %175 : vector<8x64xf32>
    %c0_182 = arith.constant 0 : index
    %c0_183 = arith.constant 0 : index
    %c0_184 = arith.constant 0 : index
    %177 = vector.load %arg13[%c0_182, %c0_183, %c0_184] : memref<1x8x64xf32, #tpu.memory_space<vmem>>, vector<1x8x64xf32>
    %178 = vector.shape_cast %177 : vector<1x8x64xf32> to vector<8x64xf32>
    %179 = vector.shape_cast %176 : vector<8x64xf32> to vector<1x8x64xf32>
    tpu.vector_store %arg13[%c0_182, %c0_183, %c0_184], %179 {strides = array<i32>} : memref<1x8x64xf32, #tpu.memory_space<vmem>>, vector<1x8x64xf32>,
    return
  }
  func.func @transform_0(%arg0: i32) -> (i32, i32, i32) {
    %c0_i32 = arith.constant 0 : i32
    %c0_i32_0 = arith.constant 0 : i32
    %c0_i32_1 = arith.constant 0 : i32
    return %arg0, %c0_i32, %c0_i32_0 : i32, i32, i32
  }
  func.func @transform_1(%arg0: i32) -> (i32, i32) {
    %c0_i32 = arith.constant 0 : i32
    %c0_i32_0 = arith.constant 0 : i32
    %c0_i32_1 = arith.constant 0 : i32
    return %c0_i32, %c0_i32_0 : i32, i32
  }
  func.func @transform_2(%arg0: i32) -> (i32, i32) {
    %c0_i32 = arith.constant 0 : i32
    %c0_i32_0 = arith.constant 0 : i32
    %c0_i32_1 = arith.constant 0 : i32
    return %c0_i32, %c0_i32_0 : i32, i32
  }
  func.func @transform_3(%arg0: i32) -> (i32, i32) {
    %c0_i32 = arith.constant 0 : i32
    %c0_i32_0 = arith.constant 0 : i32
    %c0_i32_1 = arith.constant 0 : i32
    return %c0_i32, %c0_i32_0 : i32, i32
  }
  func.func @transform_4(%arg0: i32) -> (i32, i32) {
    %c0_i32 = arith.constant 0 : i32
    %c0_i32_0 = arith.constant 0 : i32
    %c0_i32_1 = arith.constant 0 : i32
    return %c0_i32, %c0_i32_0 : i32, i32
  }
  func.func @transform_5(%arg0: i32) -> (i32, i32) {
    %c0_i32 = arith.constant 0 : i32
    %c0_i32_0 = arith.constant 0 : i32
    %c0_i32_1 = arith.constant 0 : i32
    return %c0_i32, %c0_i32_0 : i32, i32
  }
  func.func @transform_6(%arg0: i32) -> (i32, i32) {
    %c0_i32 = arith.constant 0 : i32
    %c0_i32_0 = arith.constant 0 : i32
    %c0_i32_1 = arith.constant 0 : i32
    return %c0_i32, %c0_i32_0 : i32, i32
  }
  func.func @transform_7(%arg0: i32) -> (i32, i32) {
    %c0_i32 = arith.constant 0 : i32
    %c0_i32_0 = arith.constant 0 : i32
    %c0_i32_1 = arith.constant 0 : i32
    return %c0_i32, %c0_i32_0 : i32, i32
  }
  func.func @transform_8(%arg0: i32) -> (i32, i32) {
    %c0_i32 = arith.constant 0 : i32
    %c0_i32_0 = arith.constant 0 : i32
    %c0_i32_1 = arith.constant 0 : i32
    return %c0_i32, %c0_i32_0 : i32, i32
  }
  func.func @transform_9(%arg0: i32) -> (i32, i32) {
    %c0_i32 = arith.constant 0 : i32
    %c0_i32_0 = arith.constant 0 : i32
    %c0_i32_1 = arith.constant 0 : i32
    return %c0_i32, %c0_i32_0 : i32, i32
  }
  func.func @transform_10(%arg0: i32) -> (i32, i32) {
    %c0_i32 = arith.constant 0 : i32
    %c0_i32_0 = arith.constant 0 : i32
    %c0_i32_1 = arith.constant 0 : i32
    return %c0_i32, %c0_i32_0 : i32, i32
  }
  func.func @transform_11(%arg0: i32) -> (i32, i32) {
    %c0_i32 = arith.constant 0 : i32
    %c0_i32_0 = arith.constant 0 : i32
    %c0_i32_1 = arith.constant 0 : i32
    return %c0_i32, %c0_i32_0 : i32, i32
  }
  func.func @transform_12(%arg0: i32) -> (i32, i32, i32) {
    %c0_i32 = arith.constant 0 : i32
    %c0_i32_0 = arith.constant 0 : i32
    %c0_i32_1 = arith.constant 0 : i32
    return %arg0, %c0_i32, %c0_i32_0 : i32, i32, i32
  }
}

</mosaic_0001>

<llo_original>
// kernel: tpu_custom_call.1
$region0: #{tpu_custom_call.1}
  #allocation0 [shape = 'u32[]', space=smem, size = 0x4, offset = 0x4, fixed_abs, tag = 'smem constant byte address 0x4 - core index']
  #allocation1 [shape = 'u32[144,128]{1,0:T(1,128)}', space=vmem, size = 0x12000, scoped, tag = 'internal scratch']
  #allocation2 [shape = 'f32[4,290]{1,0:T(4,128)}', space=vmem, size = 0x1800, scoped, tag = 'scratch operand']
  #allocation3 [shape = 'f32[36,256]{1,0:T(8,128)}', space=vmem, size = 0xa000, scoped, tag = 'scratch operand']
  #allocation4 [shape = 'f32[8,290]{1,0:T(8,128)}', space=vmem, size = 0x3000, scoped, tag = 'scratch operand']
  #allocation5 [shape = 'f32[72,256]{1,0:T(8,128)}', space=vmem, size = 0x12000, scoped, tag = 'scratch operand']
  #allocation6 [shape = 'f32[8,82]{1,0:T(8,128)}', space=vmem, size = 0x1000, scoped, tag = 'scratch operand']
  #allocation7 [shape = 'f32[72,64]{1,0:T(8,128)}', space=vmem, size = 0x9000, scoped, tag = 'scratch operand']
  %s0 = inlined_call_operand.vmem [shape: f32[2,4,256], index: 0, kind: input, shape index: {}]
  %s1 = inlined_call_operand.vmem [shape: f32[3,256], index: 1, kind: input, shape index: {}]
  %s2 = inlined_call_operand.vmem [shape: bf16[8,36], index: 2, kind: input, shape index: {}]
  %s3 = inlined_call_operand.vmem [shape: f32[8,1], index: 3, kind: input, shape index: {}]
  %s4 = inlined_call_operand.vmem [shape: bf16[8,72], index: 4, kind: input, shape index: {}]
  %s5 = inlined_call_operand.vmem [shape: f32[8,1], index: 5, kind: input, shape index: {}]
  %s6 = inlined_call_operand.vmem [shape: bf16[8,4], index: 6, kind: input, shape index: {}]
  %s7 = inlined_call_operand.vmem [shape: f32[8,1], index: 7, kind: input, shape index: {}]
  %s8 = inlined_call_operand.vmem [shape: f32[239,64], index: 8, kind: input, shape index: {}]
  %s9 = inlined_call_operand.vmem [shape: f32[3,64], index: 9, kind: input, shape index: {}]
  %s10 = inlined_call_operand.vmem [shape: bf16[8,72], index: 10, kind: input, shape index: {}]
  %s11 = inlined_call_operand.vmem [shape: f32[8,1], index: 11, kind: input, shape index: {}]
  %s12 = inlined_call_operand.hbm [shape: f32[2,8,64], index: 12, kind: output, shape index: {}]
  %s13 = sld [smem:[#allocation0]]
  $region81: #{tpu_custom_call.1} parent=0
    _
  %s15 = ssub.s32 1, %s13
  %s16 = scalar_select 0, %s15, %s13
  $region1: #{tpu_custom_call.1} parent=0
    #allocation8 [shape = 'u8[8192]{0}', space=vmem, size = 0x2000, scoped, tag = 'output window, operand 0']
    #allocation9 [shape = 's32[2]{0}', space=sflag, size = 0x8, scoped, tag = 'scoped memory for tpu_custom_call.1']
    %17 = vsyncpa [#allocation9], 0
    %s18 = scalar_lea.sflag [#allocation9], 1
    %19 = vsyncpa %s18, 0
    loop: start=0, step=1, limit=4
    $region2: #{tpu_custom_call.1} parent=1 // loop_pre_header
      _
    $region3: #{tpu_custom_call.1} parent=1 // loop_header
      %s21 = sphi 0, %s25
      %p22 = scmp.ge.s32.totalorder %s21, 4
      %s31 = sphi 0, %s33
      %s34 = sphi 0, %s31
      %s35 = sphi 0, %s34
      %s51 = sphi 0, %s35
      %s55 = sphi 0, %s55
      %s57 = sphi 0, %s55
      %s58 = sphi 0, %s57
      %s72 = sphi 0, %s58
      %s76 = sphi 0, %s76
      %s78 = sphi 0, %s76
      %s79 = sphi 0, %s78
      %s93 = sphi 0, %s79
      %s97 = sphi 0, %s97
      %s99 = sphi 0, %s97
      %s100 = sphi 0, %s99
      %s114 = sphi 0, %s100
      %s118 = sphi 0, %s118
      %s120 = sphi 0, %s118
      %s121 = sphi 0, %s120
      %s135 = sphi 0, %s121
      %s139 = sphi 0, %s139
      %s141 = sphi 0, %s139
      %s142 = sphi 0, %s141
      %s156 = sphi 0, %s142
      %s160 = sphi 0, %s160
      %s162 = sphi 0, %s160
      %s163 = sphi 0, %s162
      %s177 = sphi 0, %s163
      %s181 = sphi 0, %s181
      %s183 = sphi 0, %s181
      %s184 = sphi 0, %s183
      %s198 = sphi 0, %s184
      %s202 = sphi 0, %s202
      %s204 = sphi 0, %s202
      %s205 = sphi 0, %s204
      %s219 = sphi 0, %s205
      %s223 = sphi 0, %s223
      %s225 = sphi 0, %s223
      %s226 = sphi 0, %s225
      %s240 = sphi 0, %s226
      %s244 = sphi 0, %s244
      %s246 = sphi 0, %s244
      %s247 = sphi 0, %s246
      %s261 = sphi 0, %s247
      %s265 = sphi 0, %s265
      %s267 = sphi 0, %s265
      %s268 = sphi 0, %s267
      %s282 = sphi 0, %s268
      %s288 = sphi 0, %s290
      %s291 = sphi 0, %s288
      %s292 = sphi 0, %s291
      %s308 = sphi 0, %s292
    $region4: #{tpu_custom_call.1} parent=1 // loop_header_branch
      %24 = sbr.rel (%p22) target = $region8
    $region5: #{tpu_custom_call.1} parent=1 // loop_body
      %s26 = ssub.s32 %s21, 1
      %s27 = ssub.s32 %s21, 2
      %s28 = sadd.s32 %s21, 1
      %s29 = ssub.s32 %s21, %s28
      %p30 = scmp.eq.s32.totalorder %s29, 0
      %s32 = sadd.s32 %s31, 1
      %s33 = scalar_select %p30, %s31, %s32
      %p36 = pneg %p30
      %p37 = scmp.eq.s32.totalorder %s21, 1
      %p38 = por %p36, %p37
      %p39 = scmp.ne.s32.totalorder %s31, %s34
      %p40 = scmp.eq.s32.totalorder %s21, 0
      %p41 = por %p39, %p40
      %p42 = scmp.ne.s32.totalorder %s31, %s34
      %p43 = scmp.eq.s32.totalorder %s26, 1
      %p44 = por %p42, %p43
      %p45 = scmp.ne.s32.totalorder %s34, %s35
      %p46 = scmp.eq.s32.totalorder %s26, 0
      %p47 = por %p45, %p46
      %p48 = scmp.ne.s32.totalorder %s34, %s35
      %p49 = scmp.eq.s32.totalorder %s27, 1
      %p50 = por %p48, %p49
      %p52 = scmp.ne.s32.totalorder %s35, %s51
      %p53 = scmp.eq.s32.totalorder %s27, 0
      %p54 = por %p52, %p53
      %s56 = sadd.s32 %s55, 1
      %p59 = scmp.eq.s32.totalorder %s21, 1
      %p60 = scmp.ne.s32.totalorder %s55, %s57
      %p61 = scmp.eq.s32.totalorder %s21, 0
      %p62 = por %p60, %p61
      %p63 = scmp.ne.s32.totalorder %s55, %s57
      %p64 = scmp.eq.s32.totalorder %s26, 1
      %p65 = por %p63, %p64
      %p66 = scmp.ne.s32.totalorder %s57, %s58
      %p67 = scmp.eq.s32.totalorder %s26, 0
      %p68 = por %p66, %p67
      %p69 = scmp.ne.s32.totalorder %s57, %s58
      %p70 = scmp.eq.s32.totalorder %s27, 1
      %p71 = por %p69, %p70
      %p73 = scmp.ne.s32.totalorder %s58, %s72
      %p74 = scmp.eq.s32.totalorder %s27, 0
      %p75 = por %p73, %p74
      %s77 = sadd.s32 %s76, 1
      %p80 = scmp.eq.s32.totalorder %s21, 1
      %p81 = scmp.ne.s32.totalorder %s76, %s78
      %p82 = scmp.eq.s32.totalorder %s21, 0
      %p83 = por %p81, %p82
      %p84 = scmp.ne.s32.totalorder %s76, %s78
      %p85 = scmp.eq.s32.totalorder %s26, 1
      %p86 = por %p84, %p85
      %p87 = scmp.ne.s32.totalorder %s78, %s79
      %p88 = scmp.eq.s32.totalorder %s26, 0
      %p89 = por %p87, %p88
      %p90 = scmp.ne.s32.totalorder %s78, %s79
      %p91 = scmp.eq.s32.totalorder %s27, 1
      %p92 = por %p90, %p91
      %p94 = scmp.ne.s32.totalorder %s79, %s93
      %p95 = scmp.eq.s32.totalorder %s27, 0
      %p96 = por %p94, %p95
      %s98 = sadd.s32 %s97, 1
      %p101 = scmp.eq.s32.totalorder %s21, 1
      %p102 = scmp.ne.s32.totalorder %s97, %s99
      %p103 = scmp.eq.s32.totalorder %s21, 0
      %p104 = por %p102, %p103
      %p105 = scmp.ne.s32.totalorder %s97, %s99
      %p106 = scmp.eq.s32.totalorder %s26, 1
      %p107 = por %p105, %p106
      %p108 = scmp.ne.s32.totalorder %s99, %s100
      %p109 = scmp.eq.s32.totalorder %s26, 0
      %p110 = por %p108, %p109
      %p111 = scmp.ne.s32.totalorder %s99, %s100
      %p112 = scmp.eq.s32.totalorder %s27, 1
      %p113 = por %p111, %p112
      %p115 = scmp.ne.s32.totalorder %s100, %s114
      %p116 = scmp.eq.s32.totalorder %s27, 0
      %p117 = por %p115, %p116
      %s119 = sadd.s32 %s118, 1
      %p122 = scmp.eq.s32.totalorder %s21, 1
      %p123 = scmp.ne.s32.totalorder %s118, %s120
      %p124 = scmp.eq.s32.totalorder %s21, 0
      %p125 = por %p123, %p124
      %p126 = scmp.ne.s32.totalorder %s118, %s120
      %p127 = scmp.eq.s32.totalorder %s26, 1
      %p128 = por %p126, %p127
      %p129 = scmp.ne.s32.totalorder %s120, %s121
      %p130 = scmp.eq.s32.totalorder %s26, 0
      %p131 = por %p129, %p130
      %p132 = scmp.ne.s32.totalorder %s120, %s121
      %p133 = scmp.eq.s32.totalorder %s27, 1
      %p134 = por %p132, %p133
      %p136 = scmp.ne.s32.totalorder %s121, %s135
      %p137 = scmp.eq.s32.totalorder %s27, 0
      %p138 = por %p136, %p137
      %s140 = sadd.s32 %s139, 1
      %p143 = scmp.eq.s32.totalorder %s21, 1
      %p144 = scmp.ne.s32.totalorder %s139, %s141
      %p145 = scmp.eq.s32.totalorder %s21, 0
      %p146 = por %p144, %p145
      %p147 = scmp.ne.s32.totalorder %s139, %s141
      %p148 = scmp.eq.s32.totalorder %s26, 1
      %p149 = por %p147, %p148
      %p150 = scmp.ne.s32.totalorder %s141, %s142
      %p151 = scmp.eq.s32.totalorder %s26, 0
      %p152 = por %p150, %p151
      %p153 = scmp.ne.s32.totalorder %s141, %s142
      %p154 = scmp.eq.s32.totalorder %s27, 1
      %p155 = por %p153, %p154
      %p157 = scmp.ne.s32.totalorder %s142, %s156
      %p158 = scmp.eq.s32.totalorder %s27, 0
      %p159 = por %p157, %p158
      %s161 = sadd.s32 %s160, 1
      %p164 = scmp.eq.s32.totalorder %s21, 1
      %p165 = scmp.ne.s32.totalorder %s160, %s162
      %p166 = scmp.eq.s32.totalorder %s21, 0
      %p167 = por %p165, %p166
      %p168 = scmp.ne.s32.totalorder %s160, %s162
      %p169 = scmp.eq.s32.totalorder %s26, 1
      %p170 = por %p168, %p169
      %p171 = scmp.ne.s32.totalorder %s162, %s163
      %p172 = scmp.eq.s32.totalorder %s26, 0
      %p173 = por %p171, %p172
      %p174 = scmp.ne.s32.totalorder %s162, %s163
      %p175 = scmp.eq.s32.totalorder %s27, 1
      %p176 = por %p174, %p175
      %p178 = scmp.ne.s32.totalorder %s163, %s177
      %p179 = scmp.eq.s32.totalorder %s27, 0
      %p180 = por %p178, %p179
      %s182 = sadd.s32 %s181, 1
      %p185 = scmp.eq.s32.totalorder %s21, 1
      %p186 = scmp.ne.s32.totalorder %s181, %s183
      %p187 = scmp.eq.s32.totalorder %s21, 0
      %p188 = por %p186, %p187
      %p189 = scmp.ne.s32.totalorder %s181, %s183
      %p190 = scmp.eq.s32.totalorder %s26, 1
      %p191 = por %p189, %p190
      %p192 = scmp.ne.s32.totalorder %s183, %s184
      %p193 = scmp.eq.s32.totalorder %s26, 0
      %p194 = por %p192, %p193
      %p195 = scmp.ne.s32.totalorder %s183, %s184
      %p196 = scmp.eq.s32.totalorder %s27, 1
      %p197 = por %p195, %p196
      %p199 = scmp.ne.s32.totalorder %s184, %s198
      %p200 = scmp.eq.s32.totalorder %s27, 0
      %p201 = por %p199, %p200
      %s203 = sadd.s32 %s202, 1
      %p206 = scmp.eq.s32.totalorder %s21, 1
      %p207 = scmp.ne.s32.totalorder %s202, %s204
      %p208 = scmp.eq.s32.totalorder %s21, 0
      %p209 = por %p207, %p208
      %p210 = scmp.ne.s32.totalorder %s202, %s204
      %p211 = scmp.eq.s32.totalorder %s26, 1
      %p212 = por %p210, %p211
      %p213 = scmp.ne.s32.totalorder %s204, %s205
      %p214 = scmp.eq.s32.totalorder %s26, 0
      %p215 = por %p213, %p214
      %p216 = scmp.ne.s32.totalorder %s204, %s205
      %p217 = scmp.eq.s32.totalorder %s27, 1
      %p218 = por %p216, %p217
      %p220 = scmp.ne.s32.totalorder %s205, %s219
      %p221 = scmp.eq.s32.totalorder %s27, 0
      %p222 = por %p220, %p221
      %s224 = sadd.s32 %s223, 1
      %p227 = scmp.eq.s32.totalorder %s21, 1
      %p228 = scmp.ne.s32.totalorder %s223, %s225
      %p229 = scmp.eq.s32.totalorder %s21, 0
      %p230 = por %p228, %p229
      %p231 = scmp.ne.s32.totalorder %s223, %s225
      %p232 = scmp.eq.s32.totalorder %s26, 1
      %p233 = por %p231, %p232
      %p234 = scmp.ne.s32.totalorder %s225, %s226
      %p235 = scmp.eq.s32.totalorder %s26, 0
      %p236 = por %p234, %p235
      %p237 = scmp.ne.s32.totalorder %s225, %s226
      %p238 = scmp.eq.s32.totalorder %s27, 1
      %p239 = por %p237, %p238
      %p241 = scmp.ne.s32.totalorder %s226, %s240
      %p242 = scmp.eq.s32.totalorder %s27, 0
      %p243 = por %p241, %p242
      %s245 = sadd.s32 %s244, 1
      %p248 = scmp.eq.s32.totalorder %s21, 1
      %p249 = scmp.ne.s32.totalorder %s244, %s246
      %p250 = scmp.eq.s32.totalorder %s21, 0
      %p251 = por %p249, %p250
      %p252 = scmp.ne.s32.totalorder %s244, %s246
      %p253 = scmp.eq.s32.totalorder %s26, 1
      %p254 = por %p252, %p253
      %p255 = scmp.ne.s32.totalorder %s246, %s247
      %p256 = scmp.eq.s32.totalorder %s26, 0
      %p257 = por %p255, %p256
      %p258 = scmp.ne.s32.totalorder %s246, %s247
      %p259 = scmp.eq.s32.totalorder %s27, 1
      %p260 = por %p258, %p259
      %p262 = scmp.ne.s32.totalorder %s247, %s261
      %p263 = scmp.eq.s32.totalorder %s27, 0
      %p264 = por %p262, %p263
      %s266 = sadd.s32 %s265, 1
      %p269 = scmp.eq.s32.totalorder %s21, 1
      %p270 = scmp.ne.s32.totalorder %s265, %s267
      %p271 = scmp.eq.s32.totalorder %s21, 0
      %p272 = por %p270, %p271
      %p273 = scmp.ne.s32.totalorder %s265, %s267
      %p274 = scmp.eq.s32.totalorder %s26, 1
      %p275 = por %p273, %p274
      %p276 = scmp.ne.s32.totalorder %s267, %s268
      %p277 = scmp.eq.s32.totalorder %s26, 0
      %p278 = por %p276, %p277
      %p279 = scmp.ne.s32.totalorder %s267, %s268
      %p280 = scmp.eq.s32.totalorder %s27, 1
      %p281 = por %p279, %p280
      %p283 = scmp.ne.s32.totalorder %s268, %s282
      %p284 = scmp.eq.s32.totalorder %s27, 0
      %p285 = por %p283, %p284
      %s286 = ssub.s32 %s21, %s28
      %p287 = scmp.eq.s32.totalorder %s286, 0
      %s289 = sadd.s32 %s288, 1
      %s290 = scalar_select %p287, %s288, %s289
      %p293 = pneg %p287
      %p294 = scmp.eq.s32.totalorder %s21, 1
      %p295 = por %p293, %p294
      %p296 = scmp.ne.s32.totalorder %s288, %s291
      %p297 = scmp.eq.s32.totalorder %s21, 0
      %p298 = por %p296, %p297
      %p299 = scmp.ne.s32.totalorder %s288, %s291
      %p300 = scmp.eq.s32.totalorder %s26, 1
      %p301 = por %p299, %p300
      %p302 = scmp.ne.s32.totalorder %s291, %s292
      %p303 = scmp.eq.s32.totalorder %s26, 0
      %p304 = por %p302, %p303
      %p305 = scmp.ne.s32.totalorder %s291, %s292
      %p306 = scmp.eq.s32.totalorder %s27, 1
      %p307 = por %p305, %p306
      %p309 = scmp.ne.s32.totalorder %s292, %s308
      %p310 = scmp.eq.s32.totalorder %s27, 0
      %p311 = por %p309, %p310
      %p312 = scmp.le.s32.totalorder 1, %s21
      %p313 = scmp.lt.s32.totalorder %s21, 3
      %p314 = pnand %p312, %p313
      %p315 = pneg %p314
      // Predicated region
      $region9: #{tpu_custom_call.1} parent=5 // pred_check
        _
      $region10: #{tpu_custom_call.1} parent=5 // pred_check_branch
        %317 = sbr.rel (%p314) target = $region12
      $region11: #{tpu_custom_call.1} parent=5 // pred_region
        %s318 = ssub.s32 %s21, 1
        // Predicated region
        $region13: #{tpu_custom_call.1} parent=11 // pred_check
          %p319 = pneg %p68
        $region14: #{tpu_custom_call.1} parent=11 // pred_check_branch
          %321 = sbr.rel (%p319) target = $region16
        $region15: #{tpu_custom_call.1} parent=11 // pred_region
          _
        $region16: #{tpu_custom_call.1} parent=11 // pred_fallthru
          _
        // Predicated region
        $region17: #{tpu_custom_call.1} parent=11 // pred_check
          %p322 = pneg %p89
        $region18: #{tpu_custom_call.1} parent=11 // pred_check_branch
          %324 = sbr.rel (%p322) target = $region20
        $region19: #{tpu_custom_call.1} parent=11 // pred_region
          _
        $region20: #{tpu_custom_call.1} parent=11 // pred_fallthru
          _
        // Predicated region
        $region21: #{tpu_custom_call.1} parent=11 // pred_check
          %p325 = pneg %p110
        $region22: #{tpu_custom_call.1} parent=11 // pred_check_branch
          %327 = sbr.rel (%p325) target = $region24
        $region23: #{tpu_custom_call.1} parent=11 // pred_region
          _
        $region24: #{tpu_custom_call.1} parent=11 // pred_fallthru
          _
        // Predicated region
        $region25: #{tpu_custom_call.1} parent=11 // pred_check
          %p328 = pneg %p131
        $region26: #{tpu_custom_call.1} parent=11 // pred_check_branch
          %330 = sbr.rel (%p328) target = $region28
        $region27: #{tpu_custom_call.1} parent=11 // pred_region
          _
        $region28: #{tpu_custom_call.1} parent=11 // pred_fallthru
          _
        // Predicated region
        $region29: #{tpu_custom_call.1} parent=11 // pred_check
          %p331 = pneg %p152
        $region30: #{tpu_custom_call.1} parent=11 // pred_check_branch
          %333 = sbr.rel (%p331) target = $region32
        $region31: #{tpu_custom_call.1} parent=11 // pred_region
          _
        $region32: #{tpu_custom_call.1} parent=11 // pred_fallthru
          _
        // Predicated region
        $region33: #{tpu_custom_call.1} parent=11 // pred_check
          %p334 = pneg %p173
        $region34: #{tpu_custom_call.1} parent=11 // pred_check_branch
          %336 = sbr.rel (%p334) target = $region36
        $region35: #{tpu_custom_call.1} parent=11 // pred_region
          _
        $region36: #{tpu_custom_call.1} parent=11 // pred_fallthru
          _
        // Predicated region
        $region37: #{tpu_custom_call.1} parent=11 // pred_check
          %p337 = pneg %p194
        $region38: #{tpu_custom_call.1} parent=11 // pred_check_branch
          %339 = sbr.rel (%p337) target = $region40
        $region39: #{tpu_custom_call.1} parent=11 // pred_region
          _
        $region40: #{tpu_custom_call.1} parent=11 // pred_fallthru
          _
        // Predicated region
        $region41: #{tpu_custom_call.1} parent=11 // pred_check
          %p340 = pneg %p215
        $region42: #{tpu_custom_call.1} parent=11 // pred_check_branch
          %342 = sbr.rel (%p340) target = $region44
        $region43: #{tpu_custom_call.1} parent=11 // pred_region
          _
        $region44: #{tpu_custom_call.1} parent=11 // pred_fallthru
          _
        // Predicated region
        $region45: #{tpu_custom_call.1} parent=11 // pred_check
          %p343 = pneg %p236
        $region46: #{tpu_custom_call.1} parent=11 // pred_check_branch
          %345 = sbr.rel (%p343) target = $region48
        $region47: #{tpu_custom_call.1} parent=11 // pred_region
          _
        $region48: #{tpu_custom_call.1} parent=11 // pred_fallthru
          _
        // Predicated region
        $region49: #{tpu_custom_call.1} parent=11 // pred_check
          %p346 = pneg %p257
        $region50: #{tpu_custom_call.1} parent=11 // pred_check_branch
          %348 = sbr.rel (%p346) target = $region52
        $region51: #{tpu_custom_call.1} parent=11 // pred_region
          _
        $region52: #{tpu_custom_call.1} parent=11 // pred_fallthru
          _
        // Predicated region
        $region53: #{tpu_custom_call.1} parent=11 // pred_check
          %p349 = pneg %p278
        $region54: #{tpu_custom_call.1} parent=11 // pred_check_branch
          %351 = sbr.rel (%p349) target = $region56
        $region55: #{tpu_custom_call.1} parent=11 // pred_region
          _
        $region56: #{tpu_custom_call.1} parent=11 // pred_fallthru
          _
      $region12: #{tpu_custom_call.1} parent=5 // pred_fallthru
        _
      %p352 = scmp.lt.s32.totalorder %s21, 2
      // Predicated region
      $region57: #{tpu_custom_call.1} parent=5 // pred_check
        %p353 = pneg %p352
      $region58: #{tpu_custom_call.1} parent=5 // pred_check_branch
        %355 = sbr.rel (%p353) target = $region60
      $region59: #{tpu_custom_call.1} parent=5 // pred_region
        // Predicated region
        $region61: #{tpu_custom_call.1} parent=59 // pred_check
          %p356 = pneg %p41
        $region62: #{tpu_custom_call.1} parent=59 // pred_check_branch
          %358 = sbr.rel (%p356) target = $region64
        $region63: #{tpu_custom_call.1} parent=59 // pred_region
          %p359 = scmp.lt.s32.totalorder %s21, 1
          %s360 = scalar_select %p359, %s21, 1
          %s361 = smul.addr %s360, 2
          %s362 = smul.addr %s361, 4
          %s363 = scalar_lea.vmem %s0, %s362
        $region64: #{tpu_custom_call.1} parent=59 // pred_fallthru
          _
      $region60: #{tpu_custom_call.1} parent=5 // pred_fallthru
        _
      %p364 = scmp.le.s32.totalorder 1, %s21
      %p365 = scmp.lt.s32.totalorder %s21, 3
      %p366 = pnand %p364, %p365
      %p367 = pneg %p366
      // Predicated region
      $region65: #{tpu_custom_call.1} parent=5 // pred_check
        _
      $region66: #{tpu_custom_call.1} parent=5 // pred_check_branch
        %369 = sbr.rel (%p366) target = $region68
      $region67: #{tpu_custom_call.1} parent=5 // pred_region
        %s370 = ssub.s32 %s21, 1
        %p371 = scmp.lt.s32.totalorder %s26, 1
        %s372 = scalar_select %p371, %s26, 1
        %s373 = smul.addr %s372, 2
        %s374 = smul.addr %s373, 4
        %s375 = scalar_lea.vmem %s0, %s374
        %p376 = pneg %p47
        %p377 = pneg %p44
        %p378 = pneg %p68
        %p379 = pneg %p65
        %p380 = pneg %p89
        %p381 = pneg %p86
        %p382 = pneg %p110
        %p383 = pneg %p107
        %p384 = pneg %p131
        %p385 = pneg %p128
        %p386 = pneg %p152
        %p387 = pneg %p149
        %p388 = pneg %p173
        %p389 = pneg %p170
        %p390 = pneg %p194
        %p391 = pneg %p191
        %p392 = pneg %p215
        %p393 = pneg %p212
        %p394 = pneg %p236
        %p395 = pneg %p233
        %p396 = pneg %p257
        %p397 = pneg %p254
        %p398 = pneg %p278
        %p399 = pneg %p275
        %p400 = pneg %p304
        %p401 = pneg %p301
        %s402 = sand.u32 %s291, 1
        %s403 = scalar_lea.sflag [#allocation9], %s402
        %s404 = sand.u32 %s291, 1
        %s405 = smul.addr %s404, 8
        %s406 = scalar_lea.vmem [#allocation8], %s405
        %p407 = scmp.lt.s32.totalorder %s26, 1
        %s408 = scalar_select %p407, %s26, 1
        %s409 = smul.addr %s408, 2
        %s410 = smul.addr %s409, 4
        %s411 = scalar_lea.vmem %s0, %s410
        %v413 = vld [vmem:[%s411] sm:$0xff]
        %vm414 = vcmask 134144
        %415 = vst.msk [vmem:[#allocation2] sm:$0xf] %vm414, 0.0
        %vm416 = vcmask 273544
        %417 = vst.msk [vmem:[#allocation2 + $0x8] sm:$0xf] %vm416, 0.0
        %419 = vrot.lane.b32.xlu0 %v413, 17
        %v420 = vpop.permute.xlu0 %419
        %v421 = vrot.slane %v420, 4
        %vm422 = vcmask 138240
        %v423 = vsel %vm422, %v421, %v420
        %vm426 = vcmask 1043592
        %vm427 = vcmask 1047556
        %vm428 = vmor %vm427, %vm426
        %429 = vst.msk [vmem:[#allocation2] sm:$0xff] %vm428, %v423
        %430 = vst.msk [vmem:[#allocation2 + $0x8] sm:$0xf] %vm414, %v421
        %v431 = vld [vmem:[#allocation2] sm:$0xff]
        %v432 = vld [vmem:[%s1] ss:$4 sm:$0x3]
        %v434 = vlaneseq
        %v435 = vshrl.u32 %v434, 7
        %v436 = vsub.s32 0, %v435
        %v437 = vrot.slane %v432, %v436
        %v438 = vlaneseq
        %v439 = vshrl.u32 %v438, 7
        %v440 = vsub.s32 1, %v439
        %v441 = vrot.slane %v432, %v440
        %v442 = vcombine.low %v437, %v441
        %v444 = vmul.f32 %v431, %v442
        %v446 = vcombine.high %v444, %v444
        %448 = vst [vmem:[#allocation3] sm:$0xf] %v444
        %449 = vst [vmem:[#allocation3 + $0x8] sm:$0xf] %v446
        %v450 = vld [vmem:[#allocation2] sm:$0xff]
        %v451 = vld [vmem:[#allocation2 + $0x8] sm:$0xf]
        %v454 = vcombine.low %v450, %v450
        %v455 = vcombine.low %v451, %v451
        %456 = vrot.lane.b32.xlu0 %v454, 127
        %v457 = vpop.permute.xlu0 %456
        %458 = vrot.lane.b32.xlu0 %v450, 127
        %v459 = vpop.permute.xlu0 %458
        %460 = vrot.lane.b32.xlu0 %v455, 127
        %v461 = vpop.permute.xlu0 %460
        %vm462 = vcmask 1039360
        %v463 = vsel %vm462, %v457, %v459
        %v464 = vsel %vm462, %v459, %v461
        %467 = vst [vmem:[#allocation3] sm:$0xf0] %v463
        %468 = vst [vmem:[#allocation3 + $0x8] sm:$0xf0] %v464
        %v469 = vld [vmem:[#allocation2] sm:$0xff]
        %v470 = vld [vmem:[#allocation2 + $0x8] sm:$0xf]
        %s471 = scalar_lea.vmem %s1, 2
        %v472 = vld [vmem:[%s471] ss:$4 sm:$0x3]
        %v474 = vlaneseq
        %v475 = vshrl.u32 %v474, 7
        %v476 = vsub.s32 0, %v475
        %v477 = vrot.slane %v472, %v476
        %v478 = vlaneseq
        %v479 = vshrl.u32 %v478, 7
        %v480 = vsub.s32 1, %v479
        %v481 = vrot.slane %v472, %v480
        %v482 = vcombine.low %v477, %v481
        %483 = vrot.lane.b32.xlu0 %v482, 2
        %v484 = vpop.permute.xlu0 %483
        %v485 = vrot.slane %v484, 4
        %vm486 = vcmask 15360
        %v487 = vsel %vm486, %v485, %v484
        %v490 = vmul.f32 %v469, %v487
        %v491 = vmul.f32 %v470, %v485
        %v494 = vcombine.high %v490, %v490
        %495 = vrot.lane.b32.xlu0 %v490, 126
        %v496 = vpop.permute.xlu0 %495
        %497 = vrot.lane.b32.xlu0 %v494, 126
        %v498 = vpop.permute.xlu0 %497
        %499 = vrot.lane.b32.xlu0 %v491, 126
        %v500 = vpop.permute.xlu0 %499
        %vm501 = vcmask 1031168
        %v502 = vsel %vm501, %v496, %v498
        %v503 = vsel %vm501, %v498, %v500
        %506 = vst [vmem:[#allocation3 + $0x10] sm:$0xf] %v502
        %507 = vst [vmem:[#allocation3 + $0x18] sm:$0xf] %v503
        %v508 = vld [vmem:[#allocation2] sm:$0xff]
        %v509 = vld [vmem:[#allocation2 + $0x8] sm:$0xf]
        %v510 = vld [vmem:[%s1] ss:$4 sm:$0x3]
        %v512 = vlaneseq
        %v513 = vshrl.u32 %v512, 7
        %v514 = vsub.s32 0, %v513
        %v515 = vrot.slane %v510, %v514
        %v516 = vlaneseq
        %v517 = vshrl.u32 %v516, 7
        %v518 = vsub.s32 1, %v517
        %v519 = vrot.slane %v510, %v518
        %v520 = vcombine.low %v515, %v519
        %521 = vrot.lane.b32.xlu0 %v520, 16
        %v522 = vpop.permute.xlu0 %521
        %v523 = vrot.slane %v522, 4
        %vm524 = vcmask 130048
        %v525 = vsel %vm524, %v523, %v522
        %v528 = vmul.f32 %v508, %v525
        %v529 = vmul.f32 %v509, %v523
        %v532 = vcombine.low %v528, %v528
        %v533 = vcombine.low %v529, %v529
        %534 = vrot.lane.b32.xlu0 %v532, 112
        %v535 = vpop.permute.xlu0 %534
        %536 = vrot.lane.b32.xlu0 %v528, 112
        %v537 = vpop.permute.xlu0 %536
        %538 = vrot.lane.b32.xlu0 %v533, 112
        %v539 = vpop.permute.xlu0 %538
        %vm540 = vcmask 916480
        %v541 = vsel %vm540, %v535, %v537
        %v542 = vsel %vm540, %v537, %v539
        %545 = vst [vmem:[#allocation3 + $0x10] sm:$0xf0] %v541
        %546 = vst [vmem:[#allocation3 + $0x18] sm:$0xf0] %v542
        %v547 = vld [vmem:[#allocation2] sm:$0xff]
        %v548 = vld [vmem:[#allocation2 + $0x8] sm:$0xf]
        %v551 = vcombine.high %v547, %v547
        %552 = vrot.lane.b32.xlu0 %v547, 111
        %v553 = vpop.permute.xlu0 %552
        %554 = vrot.lane.b32.xlu0 %v551, 111
        %v555 = vpop.permute.xlu0 %554
        %556 = vrot.lane.b32.xlu0 %v548, 111
        %v557 = vpop.permute.xlu0 %556
        %vm558 = vcmask 908288
        %v559 = vsel %vm558, %v553, %v555
        %v560 = vsel %vm558, %v555, %v557
        %563 = vst [vmem:[#allocation3 + $0x20] sm:$0xf] %v559
        %564 = vst [vmem:[#allocation3 + $0x28] sm:$0xf] %v560
        %v565 = vld [vmem:[#allocation2] sm:$0xff]
        %v566 = vld [vmem:[#allocation2 + $0x8] sm:$0xf]
        %v567 = vld [vmem:[%s471] ss:$4 sm:$0x3]
        %v569 = vlaneseq
        %v570 = vshrl.u32 %v569, 7
        %v571 = vsub.s32 0, %v570
        %v572 = vrot.slane %v567, %v571
        %v573 = vlaneseq
        %v574 = vshrl.u32 %v573, 7
        %v575 = vsub.s32 1, %v574
        %v576 = vrot.slane %v567, %v575
        %v577 = vcombine.low %v572, %v576
        %578 = vrot.lane.b32.xlu0 %v577, 18
        %v579 = vpop.permute.xlu0 %578
        %v580 = vrot.slane %v579, 4
        %vm581 = vcmask 146432
        %v582 = vsel %vm581, %v580, %v579
        %v585 = vmul.f32 %v565, %v582
        %v586 = vmul.f32 %v566, %v580
        %v589 = vcombine.low %v585, %v585
        %v590 = vcombine.low %v586, %v586
        %591 = vrot.lane.b32.xlu0 %v589, 110
        %v592 = vpop.permute.xlu0 %591
        %593 = vrot.lane.b32.xlu0 %v585, 110
        %v594 = vpop.permute.xlu0 %593
        %595 = vrot.lane.b32.xlu0 %v590, 110
        %v596 = vpop.permute.xlu0 %595
        %vm597 = vcmask 900096
        %v598 = vsel %vm597, %v592, %v594
        %v599 = vsel %vm597, %v594, %v596
        %602 = vst [vmem:[#allocation3 + $0x20] sm:$0xf0] %v598
        %603 = vst [vmem:[#allocation3 + $0x28] sm:$0xf0] %v599
        %v604 = vld [vmem:[#allocation2] sm:$0xff]
        %v605 = vld [vmem:[#allocation2 + $0x8] sm:$0xf]
        %v606 = vld [vmem:[%s1] ss:$4 sm:$0x3]
        %v608 = vlaneseq
        %v609 = vshrl.u32 %v608, 7
        %v610 = vsub.s32 0, %v609
        %v611 = vrot.slane %v606, %v610
        %v612 = vlaneseq
        %v613 = vshrl.u32 %v612, 7
        %v614 = vsub.s32 1, %v613
        %v615 = vrot.slane %v606, %v614
        %v616 = vcombine.low %v611, %v615
        %617 = vrot.lane.b32.xlu0 %v616, 32
        %v618 = vpop.permute.xlu0 %617
        %v619 = vrot.slane %v618, 4
        %vm620 = vcmask 261120
        %v621 = vsel %vm620, %v619, %v618
        %v624 = vmul.f32 %v604, %v621
        %v625 = vmul.f32 %v605, %v619
        %v628 = vcombine.high %v624, %v624
        %629 = vrot.lane.b32.xlu0 %v624, 96
        %v630 = vpop.permute.xlu0 %629
        %631 = vrot.lane.b32.xlu0 %v628, 96
        %v632 = vpop.permute.xlu0 %631
        %633 = vrot.lane.b32.xlu0 %v625, 96
        %v634 = vpop.permute.xlu0 %633
        %vm635 = vcmask 785408
        %v636 = vsel %vm635, %v630, %v632
        %v637 = vsel %vm635, %v632, %v634
        %640 = vst [vmem:[#allocation3 + $0x30] sm:$0xf] %v636
        %641 = vst [vmem:[#allocation3 + $0x38] sm:$0xf] %v637
        %v642 = vld [vmem:[#allocation2] sm:$0xff]
        %v643 = vld [vmem:[#allocation2 + $0x8] sm:$0xf]
        %v646 = vcombine.low %v642, %v642
        %v647 = vcombine.low %v643, %v643
        %648 = vrot.lane.b32.xlu0 %v646, 95
        %v649 = vpop.permute.xlu0 %648
        %650 = vrot.lane.b32.xlu0 %v642, 95
        %v651 = vpop.permute.xlu0 %650
        %652 = vrot.lane.b32.xlu0 %v647, 95
        %v653 = vpop.permute.xlu0 %652
        %vm654 = vcmask 777216
        %v655 = vsel %vm654, %v649, %v651
        %v656 = vsel %vm654, %v651, %v653
        %659 = vst [vmem:[#allocation3 + $0x30] sm:$0xf0] %v655
        %660 = vst [vmem:[#allocation3 + $0x38] sm:$0xf0] %v656
        %v661 = vld [vmem:[#allocation2] sm:$0xff]
        %v662 = vld [vmem:[#allocation2 + $0x8] sm:$0xf]
        %v663 = vld [vmem:[%s471] ss:$4 sm:$0x3]
        %v665 = vlaneseq
        %v666 = vshrl.u32 %v665, 7
        %v667 = vsub.s32 0, %v666
        %v668 = vrot.slane %v663, %v667
        %v669 = vlaneseq
        %v670 = vshrl.u32 %v669, 7
        %v671 = vsub.s32 1, %v670
        %v672 = vrot.slane %v663, %v671
        %v673 = vcombine.low %v668, %v672
        %674 = vrot.lane.b32.xlu0 %v673, 34
        %v675 = vpop.permute.xlu0 %674
        %v676 = vrot.slane %v675, 4
        %vm677 = vcmask 277504
        %v678 = vsel %vm677, %v676, %v675
        %v681 = vmul.f32 %v661, %v678
        %v682 = vmul.f32 %v662, %v676
        %v685 = vcombine.high %v681, %v681
        %686 = vrot.lane.b32.xlu0 %v681, 94
        %v687 = vpop.permute.xlu0 %686
        %688 = vrot.lane.b32.xlu0 %v685, 94
        %v689 = vpop.permute.xlu0 %688
        %690 = vrot.lane.b32.xlu0 %v682, 94
        %v691 = vpop.permute.xlu0 %690
        %vm692 = vcmask 769024
        %v693 = vsel %vm692, %v687, %v689
        %v694 = vsel %vm692, %v689, %v691
        %697 = vst [vmem:[#allocation3 + $0x40] sm:$0xf] %v693
        %698 = vst [vmem:[#allocation3 + $0x48] sm:$0xf] %v694
        %v699 = vld [vmem:[%s2] sm:$0xf]
        %v700 = vld [vmem:[#allocation3] sm:$0xff]
        %v701 = vld [vmem:[#allocation3 + $0x8] sm:$0xff]
        %v702 = vld [vmem:[#allocation3 + $0x10] sm:$0xff]
        %v703 = vld [vmem:[#allocation3 + $0x18] sm:$0xff]
        %v704 = vld [vmem:[#allocation3 + $0x20] sm:$0xff]
        %v705 = vld [vmem:[#allocation3 + $0x28] sm:$0xff]
        %v706 = vld [vmem:[#allocation3 + $0x30] sm:$0xff]
        %v707 = vld [vmem:[#allocation3 + $0x38] sm:$0xff]
        %v708 = vld [vmem:[#allocation3 + $0x40] sm:$0xf]
        %v709 = vld [vmem:[#allocation3 + $0x48] sm:$0xf]
        %v710 = vpack.c.bf16 %v702, %v700
        %v711 = vpack.c.bf16 %v703, %v701
        %v712 = vpack.c.bf16 %v706, %v704
        %v713 = vpack.c.bf16 %v707, %v705
        %v714 = vpack.c.bf16 %v708, %v708
        %v715 = vpack.c.bf16 %v709, %v709
        %v716 = vld [vmem:[%s3] sm:$0xff]
        %718 = vset.pattern.permute.xlu0 0
        %719 = vperm.xlu0 %718, %v716
        %v720 = vpop.permute.xlu0 %719
        %vm722 = vcmask 293888
        %v724 = vsel %vm722, %v699, 0
        %vm726 = vcmask 1041408
        %v728 = vsel %vm726, %v714, 0
        %v731 = vsel %vm726, %v715, 0
        %733 = vmatprep.subr.bf16.mxu0 %v711
        %734 = vmatpush1.bf16.msra.mxu0 %v710
        %735 = vmatprep.subr.bf16.mxu0 %v713
        %736 = vmatpush1.bf16.msra.mxu0 %v712
        %737 = vmatprep.subr.bf16.mxu0 %v731
        %738 = vmatpush1.bf16.msra.mxu0 %v728
        %739 = vmatprep.subr.bf16.mxu0 0
        %740 = vmatpush1.bf16.msra.mxu0 0
        %741 = vmatprep.subr.bf16.mxu0 0
        %742 = vmatpush1.bf16.msra.mxu0 0
        %743 = vmatprep.subr.bf16.mxu0 0
        %744 = vmatpush1.bf16.msra.mxu0 0
        %745 = vmatprep.subr.bf16.mxu0 0
        %746 = vmatpush1.bf16.msra.mxu0 0
        %747 = vmatprep.subr.bf16.mxu0 0
        %748 = vmatpush1.bf16.msra.mxu0 0
        %749 = vmatprep.subr.bf16.mxu0 0
        %750 = vmatpush1.bf16.msra.mxu0 0
        %751 = vmatprep.subr.bf16.mxu0 0
        %752 = vmatpush1.bf16.msra.mxu0 0
        %753 = vmatprep.subr.bf16.mxu0 0
        %754 = vmatpush1.bf16.msra.mxu0 0
        %755 = vmatprep.subr.bf16.mxu0 0
        %756 = vmatpush1.bf16.msra.mxu0 0
        %757 = vmatprep.subr.bf16.mxu0 0
        %758 = vmatpush1.bf16.msra.mxu0 0
        %759 = vmatprep.subr.bf16.mxu0 0
        %760 = vmatpush1.bf16.msra.mxu0 0
        %761 = vmatprep.subr.bf16.mxu0 0
        %762 = vmatpush1.bf16.msra.mxu0 0
        %763 = vmatprep.subr.bf16.mxu0 0
        %764 = vmatpush1.bf16.msra.mxu0 0
        %765 = vmatprep.mubr.bf16.mxu0 0
        %766 = vmatmul.mubr.bf16.gmra.mrb[0].mxu0 %v724
        %v767 = vpop.f32.mrb[0].mxu0
        %v768 = vadd.f32 %v720, %v767
        %v769 = vpop.f32.mrb[0].mxu0
        %v770 = vadd.f32 %v720, %v769
        %v771 = vpop.f32.mrb[0].mxu0
        %v772 = vpop.f32.mrb[0].mxu0
        %773 = vdwg.mxu0
        %vm774 = vcmp.ge.f32.partialorder %v768, 0.0
        %vm775 = vcmp.ge.f32.partialorder %v770, 0.0
        %v776 = vmul.f32 %v768, 0.01
        %v777 = vmul.f32 %v770, 0.01
        %v778 = vsel %vm774, %v768, %v776
        %v779 = vsel %vm775, %v770, %v777
        %780 = vst.msk [vmem:[#allocation4] sm:$0xff] %vm422, 0.0
        %vm781 = vcmask 277640
        %782 = vst.msk [vmem:[#allocation4 + $0x10] sm:$0xff] %vm781, 0.0
        %785 = vrot.lane.b32.xlu0 %v778, 17
        %v786 = vpop.permute.xlu0 %785
        %787 = vrot.lane.b32.xlu0 %v779, 17
        %v788 = vpop.permute.xlu0 %787
        %v789 = vsel %vm422, %v786, %v788
        %vm793 = vcmask 1047688
        %794 = vst.msk [vmem:[#allocation4] sm:$0xff] %vm793, %v786
        %795 = vst [vmem:[#allocation4 + $0x8] sm:$0xff] %v789
        %796 = vst.msk [vmem:[#allocation4 + $0x10] sm:$0xff] %vm422, %v788
        %v797 = vld [vmem:[#allocation4] sm:$0xff]
        %v798 = vld [vmem:[#allocation4 + $0x8] sm:$0xff]
        %v799 = vld [vmem:[%s1] ss:$4 sm:$0x3]
        %v801 = vlaneseq
        %v802 = vshrl.u32 %v801, 7
        %v803 = vsub.s32 0, %v802
        %v804 = vrot.slane %v799, %v803
        %v805 = vlaneseq
        %v806 = vshrl.u32 %v805, 7
        %v807 = vsub.s32 1, %v806
        %v808 = vrot.slane %v799, %v807
        %v811 = vmul.f32 %v797, %v804
        %v812 = vmul.f32 %v798, %v808
        %813 = vst [vmem:[#allocation5] sm:$0xff] %v811
        %814 = vst [vmem:[#allocation5 + $0x8] sm:$0xff] %v812
        %v815 = vld [vmem:[#allocation4] sm:$0xff]
        %v816 = vld [vmem:[#allocation4 + $0x8] sm:$0xff]
        %v817 = vld [vmem:[#allocation4 + $0x10] sm:$0xff]
        %821 = vrot.lane.b32.xlu0 %v815, 127
        %v822 = vpop.permute.xlu0 %821
        %823 = vrot.lane.b32.xlu0 %v816, 127
        %v824 = vpop.permute.xlu0 %823
        %825 = vrot.lane.b32.xlu0 %v817, 127
        %v826 = vpop.permute.xlu0 %825
        %v827 = vsel %vm462, %v822, %v824
        %v828 = vsel %vm462, %v824, %v826
        %831 = vst [vmem:[#allocation5 + $0x10] sm:$0xff] %v827
        %832 = vst [vmem:[#allocation5 + $0x18] sm:$0xff] %v828
        %v833 = vld [vmem:[#allocation4] sm:$0xff]
        %v834 = vld [vmem:[#allocation4 + $0x8] sm:$0xff]
        %v835 = vld [vmem:[#allocation4 + $0x10] sm:$0xff]
        %v836 = vld [vmem:[%s471] ss:$4 sm:$0x3]
        %v838 = vlaneseq
        %v839 = vshrl.u32 %v838, 7
        %v840 = vsub.s32 0, %v839
        %v841 = vrot.slane %v836, %v840
        %v842 = vlaneseq
        %v843 = vshrl.u32 %v842, 7
        %v844 = vsub.s32 1, %v843
        %v845 = vrot.slane %v836, %v844
        %846 = vrot.lane.b32.xlu0 %v841, 2
        %v847 = vpop.permute.xlu0 %846
        %848 = vrot.lane.b32.xlu0 %v845, 2
        %v849 = vpop.permute.xlu0 %848
        %v850 = vsel %vm486, %v847, %v849
        %v854 = vmul.f32 %v833, %v847
        %v855 = vmul.f32 %v834, %v850
        %v856 = vmul.f32 %v835, %v849
        %860 = vrot.lane.b32.xlu0 %v854, 126
        %v861 = vpop.permute.xlu0 %860
        %862 = vrot.lane.b32.xlu0 %v855, 126
        %v863 = vpop.permute.xlu0 %862
        %864 = vrot.lane.b32.xlu0 %v856, 126
        %v865 = vpop.permute.xlu0 %864
        %v866 = vsel %vm501, %v861, %v863
        %v867 = vsel %vm501, %v863, %v865
        %870 = vst [vmem:[#allocation5 + $0x20] sm:$0xff] %v866
        %871 = vst [vmem:[#allocation5 + $0x28] sm:$0xff] %v867
        %v872 = vld [vmem:[#allocation4] sm:$0xff]
        %v873 = vld [vmem:[#allocation4 + $0x8] sm:$0xff]
        %v874 = vld [vmem:[#allocation4 + $0x10] sm:$0xff]
        %v875 = vld [vmem:[%s1] ss:$4 sm:$0x3]
        %v877 = vlaneseq
        %v878 = vshrl.u32 %v877, 7
        %v879 = vsub.s32 0, %v878
        %v880 = vrot.slane %v875, %v879
        %v881 = vlaneseq
        %v882 = vshrl.u32 %v881, 7
        %v883 = vsub.s32 1, %v882
        %v884 = vrot.slane %v875, %v883
        %885 = vrot.lane.b32.xlu0 %v880, 16
        %v886 = vpop.permute.xlu0 %885
        %887 = vrot.lane.b32.xlu0 %v884, 16
        %v888 = vpop.permute.xlu0 %887
        %v889 = vsel %vm524, %v886, %v888
        %v893 = vmul.f32 %v872, %v886
        %v894 = vmul.f32 %v873, %v889
        %v895 = vmul.f32 %v874, %v888
        %899 = vrot.lane.b32.xlu0 %v893, 112
        %v900 = vpop.permute.xlu0 %899
        %901 = vrot.lane.b32.xlu0 %v894, 112
        %v902 = vpop.permute.xlu0 %901
        %903 = vrot.lane.b32.xlu0 %v895, 112
        %v904 = vpop.permute.xlu0 %903
        %v905 = vsel %vm540, %v900, %v902
        %v906 = vsel %vm540, %v902, %v904
        %909 = vst [vmem:[#allocation5 + $0x30] sm:$0xff] %v905
        %910 = vst [vmem:[#allocation5 + $0x38] sm:$0xff] %v906
        %v911 = vld [vmem:[#allocation4] sm:$0xff]
        %v912 = vld [vmem:[#allocation4 + $0x8] sm:$0xff]
        %v913 = vld [vmem:[#allocation4 + $0x10] sm:$0xff]
        %917 = vrot.lane.b32.xlu0 %v911, 111
        %v918 = vpop.permute.xlu0 %917
        %919 = vrot.lane.b32.xlu0 %v912, 111
        %v920 = vpop.permute.xlu0 %919
        %921 = vrot.lane.b32.xlu0 %v913, 111
        %v922 = vpop.permute.xlu0 %921
        %v923 = vsel %vm558, %v918, %v920
        %v924 = vsel %vm558, %v920, %v922
        %927 = vst [vmem:[#allocation5 + $0x40] sm:$0xff] %v923
        %928 = vst [vmem:[#allocation5 + $0x48] sm:$0xff] %v924
        %v929 = vld [vmem:[#allocation4] sm:$0xff]
        %v930 = vld [vmem:[#allocation4 + $0x8] sm:$0xff]
        %v931 = vld [vmem:[#allocation4 + $0x10] sm:$0xff]
        %v932 = vld [vmem:[%s471] ss:$4 sm:$0x3]
        %v934 = vlaneseq
        %v935 = vshrl.u32 %v934, 7
        %v936 = vsub.s32 0, %v935
        %v937 = vrot.slane %v932, %v936
        %v938 = vlaneseq
        %v939 = vshrl.u32 %v938, 7
        %v940 = vsub.s32 1, %v939
        %v941 = vrot.slane %v932, %v940
        %942 = vrot.lane.b32.xlu0 %v937, 18
        %v943 = vpop.permute.xlu0 %942
        %944 = vrot.lane.b32.xlu0 %v941, 18
        %v945 = vpop.permute.xlu0 %944
        %v946 = vsel %vm581, %v943, %v945
        %v950 = vmul.f32 %v929, %v943
        %v951 = vmul.f32 %v930, %v946
        %v952 = vmul.f32 %v931, %v945
        %956 = vrot.lane.b32.xlu0 %v950, 110
        %v957 = vpop.permute.xlu0 %956
        %958 = vrot.lane.b32.xlu0 %v951, 110
        %v959 = vpop.permute.xlu0 %958
        %960 = vrot.lane.b32.xlu0 %v952, 110
        %v961 = vpop.permute.xlu0 %960
        %v962 = vsel %vm597, %v957, %v959
        %v963 = vsel %vm597, %v959, %v961
        %966 = vst [vmem:[#allocation5 + $0x50] sm:$0xff] %v962
        %967 = vst [vmem:[#allocation5 + $0x58] sm:$0xff] %v963
        %v968 = vld [vmem:[#allocation4] sm:$0xff]
        %v969 = vld [vmem:[#allocation4 + $0x8] sm:$0xff]
        %v970 = vld [vmem:[#allocation4 + $0x10] sm:$0xff]
        %v971 = vld [vmem:[%s1] ss:$4 sm:$0x3]
        %v973 = vlaneseq
        %v974 = vshrl.u32 %v973, 7
        %v975 = vsub.s32 0, %v974
        %v976 = vrot.slane %v971, %v975
        %v977 = vlaneseq
        %v978 = vshrl.u32 %v977, 7
        %v979 = vsub.s32 1, %v978
        %v980 = vrot.slane %v971, %v979
        %981 = vrot.lane.b32.xlu0 %v976, 32
        %v982 = vpop.permute.xlu0 %981
        %983 = vrot.lane.b32.xlu0 %v980, 32
        %v984 = vpop.permute.xlu0 %983
        %v985 = vsel %vm620, %v982, %v984
        %v989 = vmul.f32 %v968, %v982
        %v990 = vmul.f32 %v969, %v985
        %v991 = vmul.f32 %v970, %v984
        %995 = vrot.lane.b32.xlu0 %v989, 96
        %v996 = vpop.permute.xlu0 %995
        %997 = vrot.lane.b32.xlu0 %v990, 96
        %v998 = vpop.permute.xlu0 %997
        %999 = vrot.lane.b32.xlu0 %v991, 96
        %v1000 = vpop.permute.xlu0 %999
        %v1001 = vsel %vm635, %v996, %v998
        %v1002 = vsel %vm635, %v998, %v1000
        %1005 = vst [vmem:[#allocation5 + $0x60] sm:$0xff] %v1001
        %1006 = vst [vmem:[#allocation5 + $0x68] sm:$0xff] %v1002
        %v1007 = vld [vmem:[#allocation4] sm:$0xff]
        %v1008 = vld [vmem:[#allocation4 + $0x8] sm:$0xff]
        %v1009 = vld [vmem:[#allocation4 + $0x10] sm:$0xff]
        %1013 = vrot.lane.b32.xlu0 %v1007, 95
        %v1014 = vpop.permute.xlu0 %1013
        %1015 = vrot.lane.b32.xlu0 %v1008, 95
        %v1016 = vpop.permute.xlu0 %1015
        %1017 = vrot.lane.b32.xlu0 %v1009, 95
        %v1018 = vpop.permute.xlu0 %1017
        %v1019 = vsel %vm654, %v1014, %v1016
        %v1020 = vsel %vm654, %v1016, %v1018
        %1023 = vst [vmem:[#allocation5 + $0x70] sm:$0xff] %v1019
        %1024 = vst [vmem:[#allocation5 + $0x78] sm:$0xff] %v1020
        %v1025 = vld [vmem:[#allocation4] sm:$0xff]
        %v1026 = vld [vmem:[#allocation4 + $0x8] sm:$0xff]
        %v1027 = vld [vmem:[#allocation4 + $0x10] sm:$0xff]
        %v1028 = vld [vmem:[%s471] ss:$4 sm:$0x3]
        %v1030 = vlaneseq
        %v1031 = vshrl.u32 %v1030, 7
        %v1032 = vsub.s32 0, %v1031
        %v1033 = vrot.slane %v1028, %v1032
        %v1034 = vlaneseq
        %v1035 = vshrl.u32 %v1034, 7
        %v1036 = vsub.s32 1, %v1035
        %v1037 = vrot.slane %v1028, %v1036
        %1038 = vrot.lane.b32.xlu0 %v1033, 34
        %v1039 = vpop.permute.xlu0 %1038
        %1040 = vrot.lane.b32.xlu0 %v1037, 34
        %v1041 = vpop.permute.xlu0 %1040
        %v1042 = vsel %vm677, %v1039, %v1041
        %v1046 = vmul.f32 %v1025, %v1039
        %v1047 = vmul.f32 %v1026, %v1042
        %v1048 = vmul.f32 %v1027, %v1041
        %1052 = vrot.lane.b32.xlu0 %v1046, 94
        %v1053 = vpop.permute.xlu0 %1052
        %1054 = vrot.lane.b32.xlu0 %v1047, 94
        %v1055 = vpop.permute.xlu0 %1054
        %1056 = vrot.lane.b32.xlu0 %v1048, 94
        %v1057 = vpop.permute.xlu0 %1056
        %v1058 = vsel %vm692, %v1053, %v1055
        %v1059 = vsel %vm692, %v1055, %v1057
        %1062 = vst [vmem:[#allocation5 + $0x80] sm:$0xff] %v1058
        %1063 = vst [vmem:[#allocation5 + $0x88] sm:$0xff] %v1059
        %v1064 = vld [vmem:[%s4] sm:$0xf]
        %v1065 = vld [vmem:[#allocation5] sm:$0xff]
        %v1066 = vld [vmem:[#allocation5 + $0x8] sm:$0xff]
        %v1067 = vld [vmem:[#allocation5 + $0x10] sm:$0xff]
        %v1068 = vld [vmem:[#allocation5 + $0x18] sm:$0xff]
        %v1069 = vld [vmem:[#allocation5 + $0x20] sm:$0xff]
        %v1070 = vld [vmem:[#allocation5 + $0x28] sm:$0xff]
        %v1071 = vld [vmem:[#allocation5 + $0x30] sm:$0xff]
        %v1072 = vld [vmem:[#allocation5 + $0x38] sm:$0xff]
        %v1073 = vld [vmem:[#allocation5 + $0x40] sm:$0xff]
        %v1074 = vld [vmem:[#allocation5 + $0x48] sm:$0xff]
        %v1075 = vld [vmem:[#allocation5 + $0x50] sm:$0xff]
        %v1076 = vld [vmem:[#allocation5 + $0x58] sm:$0xff]
        %v1077 = vld [vmem:[#allocation5 + $0x60] sm:$0xff]
        %v1078 = vld [vmem:[#allocation5 + $0x68] sm:$0xff]
        %v1079 = vld [vmem:[#allocation5 + $0x70] sm:$0xff]
        %v1080 = vld [vmem:[#allocation5 + $0x78] sm:$0xff]
        %v1081 = vld [vmem:[#allocation5 + $0x80] sm:$0xff]
        %v1082 = vld [vmem:[#allocation5 + $0x88] sm:$0xff]
        %v1083 = vpack.c.bf16 %v1067, %v1065
        %v1084 = vpack.c.bf16 %v1068, %v1066
        %v1085 = vpack.c.bf16 %v1071, %v1069
        %v1086 = vpack.c.bf16 %v1072, %v1070
        %v1087 = vpack.c.bf16 %v1075, %v1073
        %v1088 = vpack.c.bf16 %v1076, %v1074
        %v1089 = vpack.c.bf16 %v1079, %v1077
        %v1090 = vpack.c.bf16 %v1080, %v1078
        %v1091 = vpack.c.bf16 %v1081, %v1081
        %v1092 = vpack.c.bf16 %v1082, %v1082
        %v1093 = vld [vmem:[%s5] sm:$0xff]
        %1095 = vset.pattern.permute.xlu0 0
        %1096 = vperm.xlu0 %1095, %v1093
        %v1097 = vpop.permute.xlu0 %1096
        %vm1099 = vcmask 588800
        %v1101 = vsel %vm1099, %v1064, 0
        %vm1103 = vcmask 1043456
        %v1105 = vsel %vm1103, %v1091, 0
        %v1108 = vsel %vm1103, %v1092, 0
        %1110 = vmatprep.subr.bf16.mxu0 %v1084
        %1111 = vmatpush1.bf16.msra.mxu0 %v1083
        %1112 = vmatprep.subr.bf16.mxu0 %v1086
        %1113 = vmatpush1.bf16.msra.mxu0 %v1085
        %1114 = vmatprep.subr.bf16.mxu0 %v1088
        %1115 = vmatpush1.bf16.msra.mxu0 %v1087
        %1116 = vmatprep.subr.bf16.mxu0 %v1090
        %1117 = vmatpush1.bf16.msra.mxu0 %v1089
        %1118 = vmatprep.subr.bf16.mxu0 %v1108
        %1119 = vmatpush1.bf16.msra.mxu0 %v1105
        %1120 = vmatprep.subr.bf16.mxu0 0
        %1121 = vmatpush1.bf16.msra.mxu0 0
        %1122 = vmatprep.subr.bf16.mxu0 0
        %1123 = vmatpush1.bf16.msra.mxu0 0
        %1124 = vmatprep.subr.bf16.mxu0 0
        %1125 = vmatpush1.bf16.msra.mxu0 0
        %1126 = vmatprep.subr.bf16.mxu0 0
        %1127 = vmatpush1.bf16.msra.mxu0 0
        %1128 = vmatprep.subr.bf16.mxu0 0
        %1129 = vmatpush1.bf16.msra.mxu0 0
        %1130 = vmatprep.subr.bf16.mxu0 0
        %1131 = vmatpush1.bf16.msra.mxu0 0
        %1132 = vmatprep.subr.bf16.mxu0 0
        %1133 = vmatpush1.bf16.msra.mxu0 0
        %1134 = vmatprep.subr.bf16.mxu0 0
        %1135 = vmatpush1.bf16.msra.mxu0 0
        %1136 = vmatprep.subr.bf16.mxu0 0
        %1137 = vmatpush1.bf16.msra.mxu0 0
        %1138 = vmatprep.subr.bf16.mxu0 0
        %1139 = vmatpush1.bf16.msra.mxu0 0
        %1140 = vmatprep.subr.bf16.mxu0 0
        %1141 = vmatpush1.bf16.msra.mxu0 0
        %1142 = vmatprep.mubr.bf16.mxu0 0
        %1143 = vmatmul.mubr.bf16.gmra.mrb[0].mxu0 %v1101
        %v1144 = vpop.f32.mrb[0].mxu0
        %v1145 = vadd.f32 %v1097, %v1144
        %v1146 = vpop.f32.mrb[0].mxu0
        %v1147 = vadd.f32 %v1097, %v1146
        %v1148 = vpop.f32.mrb[0].mxu0
        %v1149 = vpop.f32.mrb[0].mxu0
        %1150 = vdwg.mxu0
        %vm1151 = vcmp.ge.f32.partialorder %v1145, 0.0
        %vm1152 = vcmp.ge.f32.partialorder %v1147, 0.0
        %v1153 = vmul.f32 %v1145, 0.01
        %v1154 = vmul.f32 %v1147, 0.01
        %v1155 = vsel %vm1151, %v1145, %v1153
        %v1156 = vsel %vm1152, %v1147, %v1154
        %v1157 = vld [vmem:[%s6] sm:$0xf]
        %v1158 = vcombine.high %v413, %v413
        %v1160 = vpack.c.bf16 %v413, %v413
        %v1161 = vpack.c.bf16 %v1158, %v1158
        %v1162 = vld [vmem:[%s7] sm:$0xff]
        %1164 = vset.pattern.permute.xlu0 0
        %1165 = vperm.xlu0 %1164, %v1162
        %v1166 = vpop.permute.xlu0 %1165
        %vm1168 = vcmask 31744
        %v1170 = vsel %vm1168, %v1157, 0
        %v1173 = vsel %vm726, %v1160, 0
        %v1176 = vsel %vm726, %v1161, 0
        %1178 = vmatprep.subr.bf16.mxu0 %v1176
        %1179 = vmatpush1.bf16.msra.mxu0 %v1173
        %1180 = vmatprep.subr.bf16.mxu0 0
        %1181 = vmatpush1.bf16.msra.mxu0 0
        %1182 = vmatprep.subr.bf16.mxu0 0
        %1183 = vmatpush1.bf16.msra.mxu0 0
        %1184 = vmatprep.subr.bf16.mxu0 0
        %1185 = vmatpush1.bf16.msra.mxu0 0
        %1186 = vmatprep.subr.bf16.mxu0 0
        %1187 = vmatpush1.bf16.msra.mxu0 0
        %1188 = vmatprep.subr.bf16.mxu0 0
        %1189 = vmatpush1.bf16.msra.mxu0 0
        %1190 = vmatprep.subr.bf16.mxu0 0
        %1191 = vmatpush1.bf16.msra.mxu0 0
        %1192 = vmatprep.subr.bf16.mxu0 0
        %1193 = vmatpush1.bf16.msra.mxu0 0
        %1194 = vmatprep.subr.bf16.mxu0 0
        %1195 = vmatpush1.bf16.msra.mxu0 0
        %1196 = vmatprep.subr.bf16.mxu0 0
        %1197 = vmatpush1.bf16.msra.mxu0 0
        %1198 = vmatprep.subr.bf16.mxu0 0
        %1199 = vmatpush1.bf16.msra.mxu0 0
        %1200 = vmatprep.subr.bf16.mxu0 0
        %1201 = vmatpush1.bf16.msra.mxu0 0
        %1202 = vmatprep.subr.bf16.mxu0 0
        %1203 = vmatpush1.bf16.msra.mxu0 0
        %1204 = vmatprep.subr.bf16.mxu0 0
        %1205 = vmatpush1.bf16.msra.mxu0 0
        %1206 = vmatprep.subr.bf16.mxu0 0
        %1207 = vmatpush1.bf16.msra.mxu0 0
        %1208 = vmatprep.subr.bf16.mxu0 0
        %1209 = vmatpush1.bf16.msra.mxu0 0
        %1210 = vmatprep.mubr.bf16.mxu0 0
        %1211 = vmatmul.mubr.bf16.gmra.mrb[0].mxu0 %v1170
        %v1212 = vpop.f32.mrb[0].mxu0
        %v1213 = vadd.f32 %v1166, %v1212
        %v1214 = vpop.f32.mrb[0].mxu0
        %v1215 = vadd.f32 %v1166, %v1214
        %v1216 = vpop.f32.mrb[0].mxu0
        %v1217 = vpop.f32.mrb[0].mxu0
        %1218 = vdwg.mxu0
        %v1219 = vadd.f32 %v1213, %v1155
        %v1220 = vadd.f32 %v1215, %v1156
        %1223 = vrot.lane.b32.xlu0 %v1219, 112
        %v1224 = vpop.permute.xlu0 %1223
        %1225 = vrot.lane.b32.xlu0 %v1220, 112
        %v1226 = vpop.permute.xlu0 %1225
        %v1227 = vsel %vm540, %v1224, %v1226
        %v1230 = vmax.f32 %v1219, %v1227
        %v1231 = vmax.f32 %v1220, %v1226
        %1234 = vrot.lane.b32.xlu0 %v1230, 127
        %v1235 = vpop.permute.xlu0 %1234
        %1236 = vrot.lane.b32.xlu0 %v1231, 127
        %v1237 = vpop.permute.xlu0 %1236
        %v1238 = vsel %vm462, %v1235, %v1237
        %v1241 = vmax.f32 %v1230, %v1238
        %v1242 = vmax.f32 %v1231, %v1237
        %v1243 = vld [vmem:[%s8] sm:$0xff]
        %v1244 = vld [vmem:[%s8 + $0x8] sm:$0xff]
        %v1245 = vld [vmem:[%s8 + $0x10] sm:$0xff]
        %v1246 = vld [vmem:[%s8 + $0x18] sm:$0xff]
        %v1247 = vld [vmem:[%s8 + $0x20] sm:$0xff]
        %v1248 = vld [vmem:[%s8 + $0x28] sm:$0xff]
        %v1249 = vld [vmem:[%s8 + $0x30] sm:$0xff]
        %v1250 = vld [vmem:[%s8 + $0x38] sm:$0xff]
        %v1251 = vld [vmem:[%s8 + $0x40] sm:$0xff]
        %v1252 = vld [vmem:[%s8 + $0x48] sm:$0xff]
        %v1253 = vld [vmem:[%s8 + $0x50] sm:$0xff]
        %v1254 = vld [vmem:[%s8 + $0x58] sm:$0xff]
        %v1255 = vld [vmem:[%s8 + $0x60] sm:$0xff]
        %v1256 = vld [vmem:[%s8 + $0x68] sm:$0xff]
        %v1257 = vld [vmem:[%s8 + $0x70] sm:$0xff]
        %v1258 = vld [vmem:[%s8 + $0x78] sm:$0xff]
        %v1259 = vld [vmem:[%s8 + $0x80] sm:$0xff]
        %v1260 = vld [vmem:[%s8 + $0x88] sm:$0xff]
        %v1261 = vld [vmem:[%s8 + $0x90] sm:$0xff]
        %v1262 = vld [vmem:[%s8 + $0x98] sm:$0xff]
        %v1263 = vld [vmem:[%s8 + $0xa0] sm:$0xff]
        %v1264 = vld [vmem:[%s8 + $0xa8] sm:$0xff]
        %v1265 = vld [vmem:[%s8 + $0xb0] sm:$0xff]
        %v1266 = vld [vmem:[%s8 + $0xb8] sm:$0xff]
        %v1267 = vld [vmem:[%s8 + $0xc0] sm:$0xff]
        %v1268 = vld [vmem:[%s8 + $0xc8] sm:$0xff]
        %v1269 = vld [vmem:[%s8 + $0xd0] sm:$0xff]
        %v1270 = vld [vmem:[%s8 + $0xd8] sm:$0xff]
        %v1271 = vld [vmem:[%s8 + $0xe0] sm:$0xff]
        %v1272 = vld [vmem:[%s8 + $0xe8] sm:$0x7f]
        %v1274 = vsel %vm558, %v1242, 0
        %vm1276 = vcmask 1046528
        %v1278 = vsel %vm1276, %v1272, 0
        %1280 = vmatprep.subr.mxu0 0.0
        %v1281 = vand.u32 %v1243, 4294901760
        %1282 = vmatpush1.msra.mxu0 %v1281
        %1283 = vmatprep.subr.mxu0 0.0
        %v1284 = vand.u32 %v1244, 4294901760
        %1285 = vmatpush1.msra.mxu0 %v1284
        %1286 = vmatprep.subr.mxu0 0.0
        %v1287 = vand.u32 %v1245, 4294901760
        %1288 = vmatpush1.msra.mxu0 %v1287
        %1289 = vmatprep.subr.mxu0 0.0
        %v1290 = vand.u32 %v1246, 4294901760
        %1291 = vmatpush1.msra.mxu0 %v1290
        %1292 = vmatprep.subr.mxu0 0.0
        %v1293 = vand.u32 %v1247, 4294901760
        %1294 = vmatpush1.msra.mxu0 %v1293
        %1295 = vmatprep.subr.mxu0 0.0
        %v1296 = vand.u32 %v1248, 4294901760
        %1297 = vmatpush1.msra.mxu0 %v1296
        %1298 = vmatprep.subr.mxu0 0.0
        %v1299 = vand.u32 %v1249, 4294901760
        %1300 = vmatpush1.msra.mxu0 %v1299
        %1301 = vmatprep.subr.mxu0 0.0
        %v1302 = vand.u32 %v1250, 4294901760
        %1303 = vmatpush1.msra.mxu0 %v1302
        %1304 = vmatprep.subr.mxu0 0.0
        %v1305 = vand.u32 %v1251, 4294901760
        %1306 = vmatpush1.msra.mxu0 %v1305
        %1307 = vmatprep.subr.mxu0 0.0
        %v1308 = vand.u32 %v1252, 4294901760
        %1309 = vmatpush1.msra.mxu0 %v1308
        %1310 = vmatprep.subr.mxu0 0.0
        %v1311 = vand.u32 %v1253, 4294901760
        %1312 = vmatpush1.msra.mxu0 %v1311
        %1313 = vmatprep.subr.mxu0 0.0
        %v1314 = vand.u32 %v1254, 4294901760
        %1315 = vmatpush1.msra.mxu0 %v1314
        %1316 = vmatprep.subr.mxu0 0.0
        %v1317 = vand.u32 %v1255, 4294901760
        %1318 = vmatpush1.msra.mxu0 %v1317
        %1319 = vmatprep.subr.mxu0 0.0
        %v1320 = vand.u32 %v1256, 4294901760
        %1321 = vmatpush1.msra.mxu0 %v1320
        %1322 = vmatprep.subr.mxu0 0.0
        %v1323 = vand.u32 %v1257, 4294901760
        %1324 = vmatpush1.msra.mxu0 %v1323
        %1325 = vmatprep.subr.mxu0 0.0
        %v1326 = vand.u32 %v1258, 4294901760
        %1327 = vmatpush1.msra.mxu0 %v1326
        %1328 = vmatprep.subr.mxu0 0.0
        %v1329 = vand.u32 %v1259, 4294901760
        %1330 = vmatpush1.msra.mxu0 %v1329
        %1331 = vmatprep.subr.mxu0 0.0
        %v1332 = vand.u32 %v1260, 4294901760
        %1333 = vmatpush1.msra.mxu0 %v1332
        %1334 = vmatprep.subr.mxu0 0.0
        %v1335 = vand.u32 %v1261, 4294901760
        %1336 = vmatpush1.msra.mxu0 %v1335
        %1337 = vmatprep.subr.mxu0 0.0
        %v1338 = vand.u32 %v1262, 4294901760
        %1339 = vmatpush1.msra.mxu0 %v1338
        %1340 = vmatprep.subr.mxu0 0.0
        %v1341 = vand.u32 %v1263, 4294901760
        %1342 = vmatpush1.msra.mxu0 %v1341
        %1343 = vmatprep.subr.mxu0 0.0
        %v1344 = vand.u32 %v1264, 4294901760
        %1345 = vmatpush1.msra.mxu0 %v1344
        %1346 = vmatprep.subr.mxu0 0.0
        %v1347 = vand.u32 %v1265, 4294901760
        %1348 = vmatpush1.msra.mxu0 %v1347
        %1349 = vmatprep.subr.mxu0 0.0
        %v1350 = vand.u32 %v1266, 4294901760
        %1351 = vmatpush1.msra.mxu0 %v1350
        %1352 = vmatprep.subr.mxu0 0.0
        %v1353 = vand.u32 %v1267, 4294901760
        %1354 = vmatpush1.msra.mxu0 %v1353
        %1355 = vmatprep.subr.mxu0 0.0
        %v1356 = vand.u32 %v1268, 4294901760
        %1357 = vmatpush1.msra.mxu0 %v1356
        %1358 = vmatprep.subr.mxu0 0.0
        %v1359 = vand.u32 %v1269, 4294901760
        %1360 = vmatpush1.msra.mxu0 %v1359
        %1361 = vmatprep.subr.mxu0 0.0
        %v1362 = vand.u32 %v1270, 4294901760
        %1363 = vmatpush1.msra.mxu0 %v1362
        %1364 = vmatprep.subr.mxu0 0.0
        %v1365 = vand.u32 %v1271, 4294901760
        %1366 = vmatpush1.msra.mxu0 %v1365
        %1367 = vmatprep.subr.mxu0 0.0
        %v1368 = vand.u32 %v1278, 4294901760
        %1369 = vmatpush1.msra.mxu0 %v1368
        %1370 = vmatprep.subr.mxu0 0.0
        %1371 = vmatpush1.msra.mxu0 0.0
        %1372 = vmatprep.subr.mxu0 0.0
        %1373 = vmatpush1.msra.mxu0 0.0
        %v1374 = vand.u32 %v1274, 4294901760
        %v1375 = vsub.f32 %v1274, %v1374
        %v1376 = vand.u32 %v1375, 4294901760
        %v1377 = vsub.f32 %v1375, %v1376
        %v1378 = vand.u32 %v1377, 4294901760
        %1379 = vmatprep.mubr.f32.mxu0 %v1378
        %v1380 = vand.u32 %v1241, 4294901760
        %v1381 = vsub.f32 %v1241, %v1380
        %v1382 = vand.u32 %v1381, 4294901760
        %v1383 = vsub.f32 %v1381, %v1382
        %v1384 = vand.u32 %v1383, 4294901760
        %1385 = vmatmul.mubr.f32.gmra.mrb[0].mxu0 %v1384
        %v1386 = vpop.f32.mrb[0].mxu0
        %v1387 = vadd.f32 0.0, %v1386
        %v1388 = vpop.f32.mrb[0].mxu0
        %1389 = vdwg.mxu0
        %1390 = vmatprep.subr.mxu0 0.0
        %v1391 = vand.u32 %v1243, 4294901760
        %v1392 = vsub.f32 %v1243, %v1391
        %v1393 = vand.u32 %v1392, 4294901760
        %v1394 = vsub.f32 %v1392, %v1393
        %v1395 = vand.u32 %v1394, 4294901760
        %1396 = vmatpush1.msra.mxu0 %v1395
        %1397 = vmatprep.subr.mxu0 0.0
        %v1398 = vand.u32 %v1244, 4294901760
        %v1399 = vsub.f32 %v1244, %v1398
        %v1400 = vand.u32 %v1399, 4294901760
        %v1401 = vsub.f32 %v1399, %v1400
        %v1402 = vand.u32 %v1401, 4294901760
        %1403 = vmatpush1.msra.mxu0 %v1402
        %1404 = vmatprep.subr.mxu0 0.0
        %v1405 = vand.u32 %v1245, 4294901760
        %v1406 = vsub.f32 %v1245, %v1405
        %v1407 = vand.u32 %v1406, 4294901760
        %v1408 = vsub.f32 %v1406, %v1407
        %v1409 = vand.u32 %v1408, 4294901760
        %1410 = vmatpush1.msra.mxu0 %v1409
        %1411 = vmatprep.subr.mxu0 0.0
        %v1412 = vand.u32 %v1246, 4294901760
        %v1413 = vsub.f32 %v1246, %v1412
        %v1414 = vand.u32 %v1413, 4294901760
        %v1415 = vsub.f32 %v1413, %v1414
        %v1416 = vand.u32 %v1415, 4294901760
        %1417 = vmatpush1.msra.mxu0 %v1416
        %1418 = vmatprep.subr.mxu0 0.0
        %v1419 = vand.u32 %v1247, 4294901760
        %v1420 = vsub.f32 %v1247, %v1419
        %v1421 = vand.u32 %v1420, 4294901760
        %v1422 = vsub.f32 %v1420, %v1421
        %v1423 = vand.u32 %v1422, 4294901760
        %1424 = vmatpush1.msra.mxu0 %v1423
        %1425 = vmatprep.subr.mxu0 0.0
        %v1426 = vand.u32 %v1248, 4294901760
        %v1427 = vsub.f32 %v1248, %v1426
        %v1428 = vand.u32 %v1427, 4294901760
        %v1429 = vsub.f32 %v1427, %v1428
        %v1430 = vand.u32 %v1429, 4294901760
        %1431 = vmatpush1.msra.mxu0 %v1430
        %1432 = vmatprep.subr.mxu0 0.0
        %v1433 = vand.u32 %v1249, 4294901760
        %v1434 = vsub.f32 %v1249, %v1433
        %v1435 = vand.u32 %v1434, 4294901760
        %v1436 = vsub.f32 %v1434, %v1435
        %v1437 = vand.u32 %v1436, 4294901760
        %1438 = vmatpush1.msra.mxu0 %v1437
        %1439 = vmatprep.subr.mxu0 0.0
        %v1440 = vand.u32 %v1250, 4294901760
        %v1441 = vsub.f32 %v1250, %v1440
        %v1442 = vand.u32 %v1441, 4294901760
        %v1443 = vsub.f32 %v1441, %v1442
        %v1444 = vand.u32 %v1443, 4294901760
        %1445 = vmatpush1.msra.mxu0 %v1444
        %1446 = vmatprep.subr.mxu0 0.0
        %v1447 = vand.u32 %v1251, 4294901760
        %v1448 = vsub.f32 %v1251, %v1447
        %v1449 = vand.u32 %v1448, 4294901760
        %v1450 = vsub.f32 %v1448, %v1449
        %v1451 = vand.u32 %v1450, 4294901760
        %1452 = vmatpush1.msra.mxu0 %v1451
        %1453 = vmatprep.subr.mxu0 0.0
        %v1454 = vand.u32 %v1252, 4294901760
        %v1455 = vsub.f32 %v1252, %v1454
        %v1456 = vand.u32 %v1455, 4294901760
        %v1457 = vsub.f32 %v1455, %v1456
        %v1458 = vand.u32 %v1457, 4294901760
        %1459 = vmatpush1.msra.mxu0 %v1458
        %1460 = vmatprep.subr.mxu0 0.0
        %v1461 = vand.u32 %v1253, 4294901760
        %v1462 = vsub.f32 %v1253, %v1461
        %v1463 = vand.u32 %v1462, 4294901760
        %v1464 = vsub.f32 %v1462, %v1463
        %v1465 = vand.u32 %v1464, 4294901760
        %1466 = vmatpush1.msra.mxu0 %v1465
        %1467 = vmatprep.subr.mxu0 0.0
        %v1468 = vand.u32 %v1254, 4294901760
        %v1469 = vsub.f32 %v1254, %v1468
        %v1470 = vand.u32 %v1469, 4294901760
        %v1471 = vsub.f32 %v1469, %v1470
        %v1472 = vand.u32 %v1471, 4294901760
        %1473 = vmatpush1.msra.mxu0 %v1472
        %1474 = vmatprep.subr.mxu0 0.0
        %v1475 = vand.u32 %v1255, 4294901760
        %v1476 = vsub.f32 %v1255, %v1475
        %v1477 = vand.u32 %v1476, 4294901760
        %v1478 = vsub.f32 %v1476, %v1477
        %v1479 = vand.u32 %v1478, 4294901760
        %1480 = vmatpush1.msra.mxu0 %v1479
        %1481 = vmatprep.subr.mxu0 0.0
        %v1482 = vand.u32 %v1256, 4294901760
        %v1483 = vsub.f32 %v1256, %v1482
        %v1484 = vand.u32 %v1483, 4294901760
        %v1485 = vsub.f32 %v1483, %v1484
        %v1486 = vand.u32 %v1485, 4294901760
        %1487 = vmatpush1.msra.mxu0 %v1486
        %1488 = vmatprep.subr.mxu0 0.0
        %v1489 = vand.u32 %v1257, 4294901760
        %v1490 = vsub.f32 %v1257, %v1489
        %v1491 = vand.u32 %v1490, 4294901760
        %v1492 = vsub.f32 %v1490, %v1491
        %v1493 = vand.u32 %v1492, 4294901760
        %1494 = vmatpush1.msra.mxu0 %v1493
        %1495 = vmatprep.subr.mxu0 0.0
        %v1496 = vand.u32 %v1258, 4294901760
        %v1497 = vsub.f32 %v1258, %v1496
        %v1498 = vand.u32 %v1497, 4294901760
        %v1499 = vsub.f32 %v1497, %v1498
        %v1500 = vand.u32 %v1499, 4294901760
        %1501 = vmatpush1.msra.mxu0 %v1500
        %1502 = vmatprep.subr.mxu0 0.0
        %v1503 = vand.u32 %v1259, 4294901760
        %v1504 = vsub.f32 %v1259, %v1503
        %v1505 = vand.u32 %v1504, 4294901760
        %v1506 = vsub.f32 %v1504, %v1505
        %v1507 = vand.u32 %v1506, 4294901760
        %1508 = vmatpush1.msra.mxu0 %v1507
        %1509 = vmatprep.subr.mxu0 0.0
        %v1510 = vand.u32 %v1260, 4294901760
        %v1511 = vsub.f32 %v1260, %v1510
        %v1512 = vand.u32 %v1511, 4294901760
        %v1513 = vsub.f32 %v1511, %v1512
        %v1514 = vand.u32 %v1513, 4294901760
        %1515 = vmatpush1.msra.mxu0 %v1514
        %1516 = vmatprep.subr.mxu0 0.0
        %v1517 = vand.u32 %v1261, 4294901760
        %v1518 = vsub.f32 %v1261, %v1517
        %v1519 = vand.u32 %v1518, 4294901760
        %v1520 = vsub.f32 %v1518, %v1519
        %v1521 = vand.u32 %v1520, 4294901760
        %1522 = vmatpush1.msra.mxu0 %v1521
        %1523 = vmatprep.subr.mxu0 0.0
        %v1524 = vand.u32 %v1262, 4294901760
        %v1525 = vsub.f32 %v1262, %v1524
        %v1526 = vand.u32 %v1525, 4294901760
        %v1527 = vsub.f32 %v1525, %v1526
        %v1528 = vand.u32 %v1527, 4294901760
        %1529 = vmatpush1.msra.mxu0 %v1528
        %1530 = vmatprep.subr.mxu0 0.0
        %v1531 = vand.u32 %v1263, 4294901760
        %v1532 = vsub.f32 %v1263, %v1531
        %v1533 = vand.u32 %v1532, 4294901760
        %v1534 = vsub.f32 %v1532, %v1533
        %v1535 = vand.u32 %v1534, 4294901760
        %1536 = vmatpush1.msra.mxu0 %v1535
        %1537 = vmatprep.subr.mxu0 0.0
        %v1538 = vand.u32 %v1264, 4294901760
        %v1539 = vsub.f32 %v1264, %v1538
        %v1540 = vand.u32 %v1539, 4294901760
        %v1541 = vsub.f32 %v1539, %v1540
        %v1542 = vand.u32 %v1541, 4294901760
        %1543 = vmatpush1.msra.mxu0 %v1542
        %1544 = vmatprep.subr.mxu0 0.0
        %v1545 = vand.u32 %v1265, 4294901760
        %v1546 = vsub.f32 %v1265, %v1545
        %v1547 = vand.u32 %v1546, 4294901760
        %v1548 = vsub.f32 %v1546, %v1547
        %v1549 = vand.u32 %v1548, 4294901760
        %1550 = vmatpush1.msra.mxu0 %v1549
        %1551 = vmatprep.subr.mxu0 0.0
        %v1552 = vand.u32 %v1266, 4294901760
        %v1553 = vsub.f32 %v1266, %v1552
        %v1554 = vand.u32 %v1553, 4294901760
        %v1555 = vsub.f32 %v1553, %v1554
        %v1556 = vand.u32 %v1555, 4294901760
        %1557 = vmatpush1.msra.mxu0 %v1556
        %1558 = vmatprep.subr.mxu0 0.0
        %v1559 = vand.u32 %v1267, 4294901760
        %v1560 = vsub.f32 %v1267, %v1559
        %v1561 = vand.u32 %v1560, 4294901760
        %v1562 = vsub.f32 %v1560, %v1561
        %v1563 = vand.u32 %v1562, 4294901760
        %1564 = vmatpush1.msra.mxu0 %v1563
        %1565 = vmatprep.subr.mxu0 0.0
        %v1566 = vand.u32 %v1268, 4294901760
        %v1567 = vsub.f32 %v1268, %v1566
        %v1568 = vand.u32 %v1567, 4294901760
        %v1569 = vsub.f32 %v1567, %v1568
        %v1570 = vand.u32 %v1569, 4294901760
        %1571 = vmatpush1.msra.mxu0 %v1570
        %1572 = vmatprep.subr.mxu0 0.0
        %v1573 = vand.u32 %v1269, 4294901760
        %v1574 = vsub.f32 %v1269, %v1573
        %v1575 = vand.u32 %v1574, 4294901760
        %v1576 = vsub.f32 %v1574, %v1575
        %v1577 = vand.u32 %v1576, 4294901760
        %1578 = vmatpush1.msra.mxu0 %v1577
        %1579 = vmatprep.subr.mxu0 0.0
        %v1580 = vand.u32 %v1270, 4294901760
        %v1581 = vsub.f32 %v1270, %v1580
        %v1582 = vand.u32 %v1581, 4294901760
        %v1583 = vsub.f32 %v1581, %v1582
        %v1584 = vand.u32 %v1583, 4294901760
        %1585 = vmatpush1.msra.mxu0 %v1584
        %1586 = vmatprep.subr.mxu0 0.0
        %v1587 = vand.u32 %v1271, 4294901760
        %v1588 = vsub.f32 %v1271, %v1587
        %v1589 = vand.u32 %v1588, 4294901760
        %v1590 = vsub.f32 %v1588, %v1589
        %v1591 = vand.u32 %v1590, 4294901760
        %1592 = vmatpush1.msra.mxu0 %v1591
        %1593 = vmatprep.subr.mxu0 0.0
        %v1594 = vand.u32 %v1278, 4294901760
        %v1595 = vsub.f32 %v1278, %v1594
        %v1596 = vand.u32 %v1595, 4294901760
        %v1597 = vsub.f32 %v1595, %v1596
        %v1598 = vand.u32 %v1597, 4294901760
        %1599 = vmatpush1.msra.mxu0 %v1598
        %1600 = vmatprep.subr.mxu0 0.0
        %1601 = vmatpush1.msra.mxu0 0.0
        %1602 = vmatprep.subr.mxu0 0.0
        %1603 = vmatpush1.msra.mxu0 0.0
        %v1604 = vand.u32 %v1274, 4294901760
        %1605 = vmatprep.mubr.f32.mxu0 %v1604
        %v1606 = vand.u32 %v1241, 4294901760
        %1607 = vmatmul.mubr.f32.gmra.mrb[0].mxu0 %v1606
        %v1608 = vpop.f32.mrb[0].mxu0
        %v1609 = vadd.f32 %v1387, %v1608
        %v1610 = vpop.f32.mrb[0].mxu0
        %1611 = vdwg.mxu0
        %1612 = vmatprep.subr.mxu0 0.0
        %v1613 = vand.u32 %v1243, 4294901760
        %v1614 = vsub.f32 %v1243, %v1613
        %1615 = vmatpush1.msra.mxu0 %v1614
        %1616 = vmatprep.subr.mxu0 0.0
        %v1617 = vand.u32 %v1244, 4294901760
        %v1618 = vsub.f32 %v1244, %v1617
        %1619 = vmatpush1.msra.mxu0 %v1618
        %1620 = vmatprep.subr.mxu0 0.0
        %v1621 = vand.u32 %v1245, 4294901760
        %v1622 = vsub.f32 %v1245, %v1621
        %1623 = vmatpush1.msra.mxu0 %v1622
        %1624 = vmatprep.subr.mxu0 0.0
        %v1625 = vand.u32 %v1246, 4294901760
        %v1626 = vsub.f32 %v1246, %v1625
        %1627 = vmatpush1.msra.mxu0 %v1626
        %1628 = vmatprep.subr.mxu0 0.0
        %v1629 = vand.u32 %v1247, 4294901760
        %v1630 = vsub.f32 %v1247, %v1629
        %1631 = vmatpush1.msra.mxu0 %v1630
        %1632 = vmatprep.subr.mxu0 0.0
        %v1633 = vand.u32 %v1248, 4294901760
        %v1634 = vsub.f32 %v1248, %v1633
        %1635 = vmatpush1.msra.mxu0 %v1634
        %1636 = vmatprep.subr.mxu0 0.0
        %v1637 = vand.u32 %v1249, 4294901760
        %v1638 = vsub.f32 %v1249, %v1637
        %1639 = vmatpush1.msra.mxu0 %v1638
        %1640 = vmatprep.subr.mxu0 0.0
        %v1641 = vand.u32 %v1250, 4294901760
        %v1642 = vsub.f32 %v1250, %v1641
        %1643 = vmatpush1.msra.mxu0 %v1642
        %1644 = vmatprep.subr.mxu0 0.0
        %v1645 = vand.u32 %v1251, 4294901760
        %v1646 = vsub.f32 %v1251, %v1645
        %1647 = vmatpush1.msra.mxu0 %v1646
        %1648 = vmatprep.subr.mxu0 0.0
        %v1649 = vand.u32 %v1252, 4294901760
        %v1650 = vsub.f32 %v1252, %v1649
        %1651 = vmatpush1.msra.mxu0 %v1650
        %1652 = vmatprep.subr.mxu0 0.0
        %v1653 = vand.u32 %v1253, 4294901760
        %v1654 = vsub.f32 %v1253, %v1653
        %1655 = vmatpush1.msra.mxu0 %v1654
        %1656 = vmatprep.subr.mxu0 0.0
        %v1657 = vand.u32 %v1254, 4294901760
        %v1658 = vsub.f32 %v1254, %v1657
        %1659 = vmatpush1.msra.mxu0 %v1658
        %1660 = vmatprep.subr.mxu0 0.0
        %v1661 = vand.u32 %v1255, 4294901760
        %v1662 = vsub.f32 %v1255, %v1661
        %1663 = vmatpush1.msra.mxu0 %v1662
        %1664 = vmatprep.subr.mxu0 0.0
        %v1665 = vand.u32 %v1256, 4294901760
        %v1666 = vsub.f32 %v1256, %v1665
        %1667 = vmatpush1.msra.mxu0 %v1666
        %1668 = vmatprep.subr.mxu0 0.0
        %v1669 = vand.u32 %v1257, 4294901760
        %v1670 = vsub.f32 %v1257, %v1669
        %1671 = vmatpush1.msra.mxu0 %v1670
        %1672 = vmatprep.subr.mxu0 0.0
        %v1673 = vand.u32 %v1258, 4294901760
        %v1674 = vsub.f32 %v1258, %v1673
        %1675 = vmatpush1.msra.mxu0 %v1674
        %1676 = vmatprep.subr.mxu0 0.0
        %v1677 = vand.u32 %v1259, 4294901760
        %v1678 = vsub.f32 %v1259, %v1677
        %1679 = vmatpush1.msra.mxu0 %v1678
        %1680 = vmatprep.subr.mxu0 0.0
        %v1681 = vand.u32 %v1260, 4294901760
        %v1682 = vsub.f32 %v1260, %v1681
        %1683 = vmatpush1.msra.mxu0 %v1682
        %1684 = vmatprep.subr.mxu0 0.0
        %v1685 = vand.u32 %v1261, 4294901760
        %v1686 = vsub.f32 %v1261, %v1685
        %1687 = vmatpush1.msra.mxu0 %v1686
        %1688 = vmatprep.subr.mxu0 0.0
        %v1689 = vand.u32 %v1262, 4294901760
        %v1690 = vsub.f32 %v1262, %v1689
        %1691 = vmatpush1.msra.mxu0 %v1690
        %1692 = vmatprep.subr.mxu0 0.0
        %v1693 = vand.u32 %v1263, 4294901760
        %v1694 = vsub.f32 %v1263, %v1693
        %1695 = vmatpush1.msra.mxu0 %v1694
        %1696 = vmatprep.subr.mxu0 0.0
        %v1697 = vand.u32 %v1264, 4294901760
        %v1698 = vsub.f32 %v1264, %v1697
        %1699 = vmatpush1.msra.mxu0 %v1698
        %1700 = vmatprep.subr.mxu0 0.0
        %v1701 = vand.u32 %v1265, 4294901760
        %v1702 = vsub.f32 %v1265, %v1701
        %1703 = vmatpush1.msra.mxu0 %v1702
        %1704 = vmatprep.subr.mxu0 0.0
        %v1705 = vand.u32 %v1266, 4294901760
        %v1706 = vsub.f32 %v1266, %v1705
        %1707 = vmatpush1.msra.mxu0 %v1706
        %1708 = vmatprep.subr.mxu0 0.0
        %v1709 = vand.u32 %v1267, 4294901760
        %v1710 = vsub.f32 %v1267, %v1709
        %1711 = vmatpush1.msra.mxu0 %v1710
        %1712 = vmatprep.subr.mxu0 0.0
        %v1713 = vand.u32 %v1268, 4294901760
        %v1714 = vsub.f32 %v1268, %v1713
        %1715 = vmatpush1.msra.mxu0 %v1714
        %1716 = vmatprep.subr.mxu0 0.0
        %v1717 = vand.u32 %v1269, 4294901760
        %v1718 = vsub.f32 %v1269, %v1717
        %1719 = vmatpush1.msra.mxu0 %v1718
        %1720 = vmatprep.subr.mxu0 0.0
        %v1721 = vand.u32 %v1270, 4294901760
        %v1722 = vsub.f32 %v1270, %v1721
        %1723 = vmatpush1.msra.mxu0 %v1722
        %1724 = vmatprep.subr.mxu0 0.0
        %v1725 = vand.u32 %v1271, 4294901760
        %v1726 = vsub.f32 %v1271, %v1725
        %1727 = vmatpush1.msra.mxu0 %v1726
        %1728 = vmatprep.subr.mxu0 0.0
        %v1729 = vand.u32 %v1278, 4294901760
        %v1730 = vsub.f32 %v1278, %v1729
        %1731 = vmatpush1.msra.mxu0 %v1730
        %1732 = vmatprep.subr.mxu0 0.0
        %1733 = vmatpush1.msra.mxu0 0.0
        %1734 = vmatprep.subr.mxu0 0.0
        %1735 = vmatpush1.msra.mxu0 0.0
        %v1736 = vand.u32 %v1274, 4294901760
        %v1737 = vsub.f32 %v1274, %v1736
        %1738 = vmatprep.mubr.f32.mxu0 %v1737
        %v1739 = vand.u32 %v1241, 4294901760
        %v1740 = vsub.f32 %v1241, %v1739
        %1741 = vmatmul.mubr.f32.gmra.mrb[0].mxu0 %v1740
        %v1742 = vpop.f32.mrb[0].mxu0
        %v1743 = vadd.f32 %v1609, %v1742
        %v1744 = vpop.f32.mrb[0].mxu0
        %1745 = vdwg.mxu0
        %1746 = vmatprep.subr.mxu0 0.0
        %v1747 = vand.u32 %v1243, 4294901760
        %1748 = vmatpush1.msra.mxu0 %v1747
        %1749 = vmatprep.subr.mxu0 0.0
        %v1750 = vand.u32 %v1244, 4294901760
        %1751 = vmatpush1.msra.mxu0 %v1750
        %1752 = vmatprep.subr.mxu0 0.0
        %v1753 = vand.u32 %v1245, 4294901760
        %1754 = vmatpush1.msra.mxu0 %v1753
        %1755 = vmatprep.subr.mxu0 0.0
        %v1756 = vand.u32 %v1246, 4294901760
        %1757 = vmatpush1.msra.mxu0 %v1756
        %1758 = vmatprep.subr.mxu0 0.0
        %v1759 = vand.u32 %v1247, 4294901760
        %1760 = vmatpush1.msra.mxu0 %v1759
        %1761 = vmatprep.subr.mxu0 0.0
        %v1762 = vand.u32 %v1248, 4294901760
        %1763 = vmatpush1.msra.mxu0 %v1762
        %1764 = vmatprep.subr.mxu0 0.0
        %v1765 = vand.u32 %v1249, 4294901760
        %1766 = vmatpush1.msra.mxu0 %v1765
        %1767 = vmatprep.subr.mxu0 0.0
        %v1768 = vand.u32 %v1250, 4294901760
        %1769 = vmatpush1.msra.mxu0 %v1768
        %1770 = vmatprep.subr.mxu0 0.0
        %v1771 = vand.u32 %v1251, 4294901760
        %1772 = vmatpush1.msra.mxu0 %v1771
        %1773 = vmatprep.subr.mxu0 0.0
        %v1774 = vand.u32 %v1252, 4294901760
        %1775 = vmatpush1.msra.mxu0 %v1774
        %1776 = vmatprep.subr.mxu0 0.0
        %v1777 = vand.u32 %v1253, 4294901760
        %1778 = vmatpush1.msra.mxu0 %v1777
        %1779 = vmatprep.subr.mxu0 0.0
        %v1780 = vand.u32 %v1254, 4294901760
        %1781 = vmatpush1.msra.mxu0 %v1780
        %1782 = vmatprep.subr.mxu0 0.0
        %v1783 = vand.u32 %v1255, 4294901760
        %1784 = vmatpush1.msra.mxu0 %v1783
        %1785 = vmatprep.subr.mxu0 0.0
        %v1786 = vand.u32 %v1256, 4294901760
        %1787 = vmatpush1.msra.mxu0 %v1786
        %1788 = vmatprep.subr.mxu0 0.0
        %v1789 = vand.u32 %v1257, 4294901760
        %1790 = vmatpush1.msra.mxu0 %v1789
        %1791 = vmatprep.subr.mxu0 0.0
        %v1792 = vand.u32 %v1258, 4294901760
        %1793 = vmatpush1.msra.mxu0 %v1792
        %1794 = vmatprep.subr.mxu0 0.0
        %v1795 = vand.u32 %v1259, 4294901760
        %1796 = vmatpush1.msra.mxu0 %v1795
        %1797 = vmatprep.subr.mxu0 0.0
        %v1798 = vand.u32 %v1260, 4294901760
        %1799 = vmatpush1.msra.mxu0 %v1798
        %1800 = vmatprep.subr.mxu0 0.0
        %v1801 = vand.u32 %v1261, 4294901760
        %1802 = vmatpush1.msra.mxu0 %v1801
        %1803 = vmatprep.subr.mxu0 0.0
        %v1804 = vand.u32 %v1262, 4294901760
        %1805 = vmatpush1.msra.mxu0 %v1804
        %1806 = vmatprep.subr.mxu0 0.0
        %v1807 = vand.u32 %v1263, 4294901760
        %1808 = vmatpush1.msra.mxu0 %v1807
        %1809 = vmatprep.subr.mxu0 0.0
        %v1810 = vand.u32 %v1264, 4294901760
        %1811 = vmatpush1.msra.mxu0 %v1810
        %1812 = vmatprep.subr.mxu0 0.0
        %v1813 = vand.u32 %v1265, 4294901760
        %1814 = vmatpush1.msra.mxu0 %v1813
        %1815 = vmatprep.subr.mxu0 0.0
        %v1816 = vand.u32 %v1266, 4294901760
        %1817 = vmatpush1.msra.mxu0 %v1816
        %1818 = vmatprep.subr.mxu0 0.0
        %v1819 = vand.u32 %v1267, 4294901760
        %1820 = vmatpush1.msra.mxu0 %v1819
        %1821 = vmatprep.subr.mxu0 0.0
        %v1822 = vand.u32 %v1268, 4294901760
        %1823 = vmatpush1.msra.mxu0 %v1822
        %1824 = vmatprep.subr.mxu0 0.0
        %v1825 = vand.u32 %v1269, 4294901760
        %1826 = vmatpush1.msra.mxu0 %v1825
        %1827 = vmatprep.subr.mxu0 0.0
        %v1828 = vand.u32 %v1270, 4294901760
        %1829 = vmatpush1.msra.mxu0 %v1828
        %1830 = vmatprep.subr.mxu0 0.0
        %v1831 = vand.u32 %v1271, 4294901760
        %1832 = vmatpush1.msra.mxu0 %v1831
        %1833 = vmatprep.subr.mxu0 0.0
        %v1834 = vand.u32 %v1278, 4294901760
        %1835 = vmatpush1.msra.mxu0 %v1834
        %1836 = vmatprep.subr.mxu0 0.0
        %1837 = vmatpush1.msra.mxu0 0.0
        %1838 = vmatprep.subr.mxu0 0.0
        %1839 = vmatpush1.msra.mxu0 0.0
        %v1840 = vand.u32 %v1274, 4294901760
        %v1841 = vsub.f32 %v1274, %v1840
        %v1842 = vand.u32 %v1841, 4294901760
        %1843 = vmatprep.mubr.f32.mxu0 %v1842
        %v1844 = vand.u32 %v1241, 4294901760
        %v1845 = vsub.f32 %v1241, %v1844
        %v1846 = vand.u32 %v1845, 4294901760
        %1847 = vmatmul.mubr.f32.gmra.mrb[0].mxu0 %v1846
        %v1848 = vpop.f32.mrb[0].mxu0
        %v1849 = vadd.f32 %v1743, %v1848
        %v1850 = vpop.f32.mrb[0].mxu0
        %1851 = vdwg.mxu0
        %1852 = vmatprep.subr.mxu0 0.0
        %v1853 = vand.u32 %v1243, 4294901760
        %v1854 = vsub.f32 %v1243, %v1853
        %v1855 = vand.u32 %v1854, 4294901760
        %1856 = vmatpush1.msra.mxu0 %v1855
        %1857 = vmatprep.subr.mxu0 0.0
        %v1858 = vand.u32 %v1244, 4294901760
        %v1859 = vsub.f32 %v1244, %v1858
        %v1860 = vand.u32 %v1859, 4294901760
        %1861 = vmatpush1.msra.mxu0 %v1860
        %1862 = vmatprep.subr.mxu0 0.0
        %v1863 = vand.u32 %v1245, 4294901760
        %v1864 = vsub.f32 %v1245, %v1863
        %v1865 = vand.u32 %v1864, 4294901760
        %1866 = vmatpush1.msra.mxu0 %v1865
        %1867 = vmatprep.subr.mxu0 0.0
        %v1868 = vand.u32 %v1246, 4294901760
        %v1869 = vsub.f32 %v1246, %v1868
        %v1870 = vand.u32 %v1869, 4294901760
        %1871 = vmatpush1.msra.mxu0 %v1870
        %1872 = vmatprep.subr.mxu0 0.0
        %v1873 = vand.u32 %v1247, 4294901760
        %v1874 = vsub.f32 %v1247, %v1873
        %v1875 = vand.u32 %v1874, 4294901760
        %1876 = vmatpush1.msra.mxu0 %v1875
        %1877 = vmatprep.subr.mxu0 0.0
        %v1878 = vand.u32 %v1248, 4294901760
        %v1879 = vsub.f32 %v1248, %v1878
        %v1880 = vand.u32 %v1879, 4294901760
        %1881 = vmatpush1.msra.mxu0 %v1880
        %1882 = vmatprep.subr.mxu0 0.0
        %v1883 = vand.u32 %v1249, 4294901760
        %v1884 = vsub.f32 %v1249, %v1883
        %v1885 = vand.u32 %v1884, 4294901760
        %1886 = vmatpush1.msra.mxu0 %v1885
        %1887 = vmatprep.subr.mxu0 0.0
        %v1888 = vand.u32 %v1250, 4294901760
        %v1889 = vsub.f32 %v1250, %v1888
        %v1890 = vand.u32 %v1889, 4294901760
        %1891 = vmatpush1.msra.mxu0 %v1890
        %1892 = vmatprep.subr.mxu0 0.0
        %v1893 = vand.u32 %v1251, 4294901760
        %v1894 = vsub.f32 %v1251, %v1893
        %v1895 = vand.u32 %v1894, 4294901760
        %1896 = vmatpush1.msra.mxu0 %v1895
        %1897 = vmatprep.subr.mxu0 0.0
        %v1898 = vand.u32 %v1252, 4294901760
        %v1899 = vsub.f32 %v1252, %v1898
        %v1900 = vand.u32 %v1899, 4294901760
        %1901 = vmatpush1.msra.mxu0 %v1900
        %1902 = vmatprep.subr.mxu0 0.0
        %v1903 = vand.u32 %v1253, 4294901760
        %v1904 = vsub.f32 %v1253, %v1903
        %v1905 = vand.u32 %v1904, 4294901760
        %1906 = vmatpush1.msra.mxu0 %v1905
        %1907 = vmatprep.subr.mxu0 0.0
        %v1908 = vand.u32 %v1254, 4294901760
        %v1909 = vsub.f32 %v1254, %v1908
        %v1910 = vand.u32 %v1909, 4294901760
        %1911 = vmatpush1.msra.mxu0 %v1910
        %1912 = vmatprep.subr.mxu0 0.0
        %v1913 = vand.u32 %v1255, 4294901760
        %v1914 = vsub.f32 %v1255, %v1913
        %v1915 = vand.u32 %v1914, 4294901760
        %1916 = vmatpush1.msra.mxu0 %v1915
        %1917 = vmatprep.subr.mxu0 0.0
        %v1918 = vand.u32 %v1256, 4294901760
        %v1919 = vsub.f32 %v1256, %v1918
        %v1920 = vand.u32 %v1919, 4294901760
        %1921 = vmatpush1.msra.mxu0 %v1920
        %1922 = vmatprep.subr.mxu0 0.0
        %v1923 = vand.u32 %v1257, 4294901760
        %v1924 = vsub.f32 %v1257, %v1923
        %v1925 = vand.u32 %v1924, 4294901760
        %1926 = vmatpush1.msra.mxu0 %v1925
        %1927 = vmatprep.subr.mxu0 0.0
        %v1928 = vand.u32 %v1258, 4294901760
        %v1929 = vsub.f32 %v1258, %v1928
        %v1930 = vand.u32 %v1929, 4294901760
        %1931 = vmatpush1.msra.mxu0 %v1930
        %1932 = vmatprep.subr.mxu0 0.0
        %v1933 = vand.u32 %v1259, 4294901760
        %v1934 = vsub.f32 %v1259, %v1933
        %v1935 = vand.u32 %v1934, 4294901760
        %1936 = vmatpush1.msra.mxu0 %v1935
        %1937 = vmatprep.subr.mxu0 0.0
        %v1938 = vand.u32 %v1260, 4294901760
        %v1939 = vsub.f32 %v1260, %v1938
        %v1940 = vand.u32 %v1939, 4294901760
        %1941 = vmatpush1.msra.mxu0 %v1940
        %1942 = vmatprep.subr.mxu0 0.0
        %v1943 = vand.u32 %v1261, 4294901760
        %v1944 = vsub.f32 %v1261, %v1943
        %v1945 = vand.u32 %v1944, 4294901760
        %1946 = vmatpush1.msra.mxu0 %v1945
        %1947 = vmatprep.subr.mxu0 0.0
        %v1948 = vand.u32 %v1262, 4294901760
        %v1949 = vsub.f32 %v1262, %v1948
        %v1950 = vand.u32 %v1949, 4294901760
        %1951 = vmatpush1.msra.mxu0 %v1950
        %1952 = vmatprep.subr.mxu0 0.0
        %v1953 = vand.u32 %v1263, 4294901760
        %v1954 = vsub.f32 %v1263, %v1953
        %v1955 = vand.u32 %v1954, 4294901760
        %1956 = vmatpush1.msra.mxu0 %v1955
        %1957 = vmatprep.subr.mxu0 0.0
        %v1958 = vand.u32 %v1264, 4294901760
        %v1959 = vsub.f32 %v1264, %v1958
        %v1960 = vand.u32 %v1959, 4294901760
        %1961 = vmatpush1.msra.mxu0 %v1960
        %1962 = vmatprep.subr.mxu0 0.0
        %v1963 = vand.u32 %v1265, 4294901760
        %v1964 = vsub.f32 %v1265, %v1963
        %v1965 = vand.u32 %v1964, 4294901760
        %1966 = vmatpush1.msra.mxu0 %v1965
        %1967 = vmatprep.subr.mxu0 0.0
        %v1968 = vand.u32 %v1266, 4294901760
        %v1969 = vsub.f32 %v1266, %v1968
        %v1970 = vand.u32 %v1969, 4294901760
        %1971 = vmatpush1.msra.mxu0 %v1970
        %1972 = vmatprep.subr.mxu0 0.0
        %v1973 = vand.u32 %v1267, 4294901760
        %v1974 = vsub.f32 %v1267, %v1973
        %v1975 = vand.u32 %v1974, 4294901760
        %1976 = vmatpush1.msra.mxu0 %v1975
        %1977 = vmatprep.subr.mxu0 0.0
        %v1978 = vand.u32 %v1268, 4294901760
        %v1979 = vsub.f32 %v1268, %v1978
        %v1980 = vand.u32 %v1979, 4294901760
        %1981 = vmatpush1.msra.mxu0 %v1980
        %1982 = vmatprep.subr.mxu0 0.0
        %v1983 = vand.u32 %v1269, 4294901760
        %v1984 = vsub.f32 %v1269, %v1983
        %v1985 = vand.u32 %v1984, 4294901760
        %1986 = vmatpush1.msra.mxu0 %v1985
        %1987 = vmatprep.subr.mxu0 0.0
        %v1988 = vand.u32 %v1270, 4294901760
        %v1989 = vsub.f32 %v1270, %v1988
        %v1990 = vand.u32 %v1989, 4294901760
        %1991 = vmatpush1.msra.mxu0 %v1990
        %1992 = vmatprep.subr.mxu0 0.0
        %v1993 = vand.u32 %v1271, 4294901760
        %v1994 = vsub.f32 %v1271, %v1993
        %v1995 = vand.u32 %v1994, 4294901760
        %1996 = vmatpush1.msra.mxu0 %v1995
        %1997 = vmatprep.subr.mxu0 0.0
        %v1998 = vand.u32 %v1278, 4294901760
        %v1999 = vsub.f32 %v1278, %v1998
        %v2000 = vand.u32 %v1999, 4294901760
        %2001 = vmatpush1.msra.mxu0 %v2000
        %2002 = vmatprep.subr.mxu0 0.0
        %2003 = vmatpush1.msra.mxu0 0.0
        %2004 = vmatprep.subr.mxu0 0.0
        %2005 = vmatpush1.msra.mxu0 0.0
        %v2006 = vand.u32 %v1274, 4294901760
        %2007 = vmatprep.mubr.f32.mxu0 %v2006
        %v2008 = vand.u32 %v1241, 4294901760
        %2009 = vmatmul.mubr.f32.gmra.mrb[0].mxu0 %v2008
        %v2010 = vpop.f32.mrb[0].mxu0
        %v2011 = vadd.f32 %v1849, %v2010
        %v2012 = vpop.f32.mrb[0].mxu0
        %2013 = vdwg.mxu0
        %2014 = vmatprep.subr.mxu0 0.0
        %v2015 = vand.u32 %v1243, 4294901760
        %2016 = vmatpush1.msra.mxu0 %v2015
        %2017 = vmatprep.subr.mxu0 0.0
        %v2018 = vand.u32 %v1244, 4294901760
        %2019 = vmatpush1.msra.mxu0 %v2018
        %2020 = vmatprep.subr.mxu0 0.0
        %v2021 = vand.u32 %v1245, 4294901760
        %2022 = vmatpush1.msra.mxu0 %v2021
        %2023 = vmatprep.subr.mxu0 0.0
        %v2024 = vand.u32 %v1246, 4294901760
        %2025 = vmatpush1.msra.mxu0 %v2024
        %2026 = vmatprep.subr.mxu0 0.0
        %v2027 = vand.u32 %v1247, 4294901760
        %2028 = vmatpush1.msra.mxu0 %v2027
        %2029 = vmatprep.subr.mxu0 0.0
        %v2030 = vand.u32 %v1248, 4294901760
        %2031 = vmatpush1.msra.mxu0 %v2030
        %2032 = vmatprep.subr.mxu0 0.0
        %v2033 = vand.u32 %v1249, 4294901760
        %2034 = vmatpush1.msra.mxu0 %v2033
        %2035 = vmatprep.subr.mxu0 0.0
        %v2036 = vand.u32 %v1250, 4294901760
        %2037 = vmatpush1.msra.mxu0 %v2036
        %2038 = vmatprep.subr.mxu0 0.0
        %v2039 = vand.u32 %v1251, 4294901760
        %2040 = vmatpush1.msra.mxu0 %v2039
        %2041 = vmatprep.subr.mxu0 0.0
        %v2042 = vand.u32 %v1252, 4294901760
        %2043 = vmatpush1.msra.mxu0 %v2042
        %2044 = vmatprep.subr.mxu0 0.0
        %v2045 = vand.u32 %v1253, 4294901760
        %2046 = vmatpush1.msra.mxu0 %v2045
        %2047 = vmatprep.subr.mxu0 0.0
        %v2048 = vand.u32 %v1254, 4294901760
        %2049 = vmatpush1.msra.mxu0 %v2048
        %2050 = vmatprep.subr.mxu0 0.0
        %v2051 = vand.u32 %v1255, 4294901760
        %2052 = vmatpush1.msra.mxu0 %v2051
        %2053 = vmatprep.subr.mxu0 0.0
        %v2054 = vand.u32 %v1256, 4294901760
        %2055 = vmatpush1.msra.mxu0 %v2054
        %2056 = vmatprep.subr.mxu0 0.0
        %v2057 = vand.u32 %v1257, 4294901760
        %2058 = vmatpush1.msra.mxu0 %v2057
        %2059 = vmatprep.subr.mxu0 0.0
        %v2060 = vand.u32 %v1258, 4294901760
        %2061 = vmatpush1.msra.mxu0 %v2060
        %2062 = vmatprep.subr.mxu0 0.0
        %v2063 = vand.u32 %v1259, 4294901760
        %2064 = vmatpush1.msra.mxu0 %v2063
        %2065 = vmatprep.subr.mxu0 0.0
        %v2066 = vand.u32 %v1260, 4294901760
        %2067 = vmatpush1.msra.mxu0 %v2066
        %2068 = vmatprep.subr.mxu0 0.0
        %v2069 = vand.u32 %v1261, 4294901760
        %2070 = vmatpush1.msra.mxu0 %v2069
        %2071 = vmatprep.subr.mxu0 0.0
        %v2072 = vand.u32 %v1262, 4294901760
        %2073 = vmatpush1.msra.mxu0 %v2072
        %2074 = vmatprep.subr.mxu0 0.0
        %v2075 = vand.u32 %v1263, 4294901760
        %2076 = vmatpush1.msra.mxu0 %v2075
        %2077 = vmatprep.subr.mxu0 0.0
        %v2078 = vand.u32 %v1264, 4294901760
        %2079 = vmatpush1.msra.mxu0 %v2078
        %2080 = vmatprep.subr.mxu0 0.0
        %v2081 = vand.u32 %v1265, 4294901760
        %2082 = vmatpush1.msra.mxu0 %v2081
        %2083 = vmatprep.subr.mxu0 0.0
        %v2084 = vand.u32 %v1266, 4294901760
        %2085 = vmatpush1.msra.mxu0 %v2084
        %2086 = vmatprep.subr.mxu0 0.0
        %v2087 = vand.u32 %v1267, 4294901760
        %2088 = vmatpush1.msra.mxu0 %v2087
        %2089 = vmatprep.subr.mxu0 0.0
        %v2090 = vand.u32 %v1268, 4294901760
        %2091 = vmatpush1.msra.mxu0 %v2090
        %2092 = vmatprep.subr.mxu0 0.0
        %v2093 = vand.u32 %v1269, 4294901760
        %2094 = vmatpush1.msra.mxu0 %v2093
        %2095 = vmatprep.subr.mxu0 0.0
        %v2096 = vand.u32 %v1270, 4294901760
        %2097 = vmatpush1.msra.mxu0 %v2096
        %2098 = vmatprep.subr.mxu0 0.0
        %v2099 = vand.u32 %v1271, 4294901760
        %2100 = vmatpush1.msra.mxu0 %v2099
        %2101 = vmatprep.subr.mxu0 0.0
        %v2102 = vand.u32 %v1278, 4294901760
        %2103 = vmatpush1.msra.mxu0 %v2102
        %2104 = vmatprep.subr.mxu0 0.0
        %2105 = vmatpush1.msra.mxu0 0.0
        %2106 = vmatprep.subr.mxu0 0.0
        %2107 = vmatpush1.msra.mxu0 0.0
        %v2108 = vand.u32 %v1274, 4294901760
        %2109 = vmatprep.mubr.f32.mxu0 %v2108
        %v2110 = vand.u32 %v1241, 4294901760
        %2111 = vmatmul.mubr.f32.gmra.mrb[0].mxu0 %v2110
        %v2112 = vpop.f32.mrb[0].mxu0
        %v2113 = vadd.f32 %v2011, %v2112
        %v2114 = vpop.f32.mrb[0].mxu0
        %2115 = vdwg.mxu0
        %vm2116 = vcmask 72704
        %2117 = vst.msk [vmem:[#allocation6] sm:$0xff] %vm2116, 0.0
        %vm2118 = vcmask 671304
        %2119 = vst.msk [vmem:[#allocation6] sm:$0xff] %vm2118, 0.0
        %2121 = vrot.lane.b32.xlu0 %v2113, 9
        %v2122 = vpop.permute.xlu0 %2121
        %vm2124 = vcmask 597064
        %2125 = vst.msk [vmem:[#allocation6] sm:$0xff] %vm2124, %v2122
        %v2126 = vld [vmem:[#allocation6] sm:$0xff]
        %v2127 = vld [vmem:[%s9] sm:$0x1]
        %v2128 = vlaneseq
        %v2129 = vshrl.u32 %v2128, 7
        %v2130 = vsub.s32 0, %v2129
        %v2131 = vrot.slane %v2127, %v2130
        %v2132 = vmul.f32 %v2126, %v2131
        %vm2133 = vcmask 523264
        %2134 = vst.msk [vmem:[#allocation7] sm:$0xff] %vm2133, %v2132
        %v2135 = vld [vmem:[#allocation6] sm:$0xff]
        %2137 = vrot.lane.b32.xlu0 %v2135, 127
        %v2138 = vpop.permute.xlu0 %2137
        %2140 = vst.msk [vmem:[#allocation7 + $0x8] sm:$0xff] %vm2133, %v2138
        %v2141 = vld [vmem:[#allocation6] sm:$0xff]
        %v2142 = vld [vmem:[%s9 + $0x2] sm:$0x1]
        %v2143 = vlaneseq
        %v2144 = vshrl.u32 %v2143, 7
        %v2145 = vsub.s32 0, %v2144
        %v2146 = vrot.slane %v2142, %v2145
        %2148 = vrot.lane.b32.xlu0 %v2146, 2
        %v2149 = vpop.permute.xlu0 %2148
        %v2151 = vmul.f32 %v2141, %v2149
        %2153 = vrot.lane.b32.xlu0 %v2151, 126
        %v2154 = vpop.permute.xlu0 %2153
        %2156 = vst.msk [vmem:[#allocation7 + $0x10] sm:$0xff] %vm2133, %v2154
        %v2157 = vld [vmem:[#allocation6] sm:$0xff]
        %v2158 = vld [vmem:[%s9] sm:$0x1]
        %v2159 = vlaneseq
        %v2160 = vshrl.u32 %v2159, 7
        %v2161 = vsub.s32 0, %v2160
        %v2162 = vrot.slane %v2158, %v2161
        %2164 = vrot.lane.b32.xlu0 %v2162, 8
        %v2165 = vpop.permute.xlu0 %2164
        %v2167 = vmul.f32 %v2157, %v2165
        %2169 = vrot.lane.b32.xlu0 %v2167, 120
        %v2170 = vpop.permute.xlu0 %2169
        %2172 = vst.msk [vmem:[#allocation7 + $0x18] sm:$0xff] %vm2133, %v2170
        %v2173 = vld [vmem:[#allocation6] sm:$0xff]
        %2175 = vrot.lane.b32.xlu0 %v2173, 119
        %v2176 = vpop.permute.xlu0 %2175
        %2178 = vst.msk [vmem:[#allocation7 + $0x20] sm:$0xff] %vm2133, %v2176
        %v2179 = vld [vmem:[#allocation6] sm:$0xff]
        %v2180 = vld [vmem:[%s9 + $0x2] sm:$0x1]
        %v2181 = vlaneseq
        %v2182 = vshrl.u32 %v2181, 7
        %v2183 = vsub.s32 0, %v2182
        %v2184 = vrot.slane %v2180, %v2183
        %2186 = vrot.lane.b32.xlu0 %v2184, 10
        %v2187 = vpop.permute.xlu0 %2186
        %v2189 = vmul.f32 %v2179, %v2187
        %2191 = vrot.lane.b32.xlu0 %v2189, 118
        %v2192 = vpop.permute.xlu0 %2191
        %2194 = vst.msk [vmem:[#allocation7 + $0x28] sm:$0xff] %vm2133, %v2192
        %v2195 = vld [vmem:[#allocation6] sm:$0xff]
        %v2196 = vld [vmem:[%s9] sm:$0x1]
        %v2197 = vlaneseq
        %v2198 = vshrl.u32 %v2197, 7
        %v2199 = vsub.s32 0, %v2198
        %v2200 = vrot.slane %v2196, %v2199
        %2202 = vrot.lane.b32.xlu0 %v2200, 16
        %v2203 = vpop.permute.xlu0 %2202
        %v2205 = vmul.f32 %v2195, %v2203
        %2207 = vrot.lane.b32.xlu0 %v2205, 112
        %v2208 = vpop.permute.xlu0 %2207
        %2210 = vst.msk [vmem:[#allocation7 + $0x30] sm:$0xff] %vm2133, %v2208
        %v2211 = vld [vmem:[#allocation6] sm:$0xff]
        %2213 = vrot.lane.b32.xlu0 %v2211, 111
        %v2214 = vpop.permute.xlu0 %2213
        %2216 = vst.msk [vmem:[#allocation7 + $0x38] sm:$0xff] %vm2133, %v2214
        %v2217 = vld [vmem:[#allocation6] sm:$0xff]
        %v2218 = vld [vmem:[%s9 + $0x2] sm:$0x1]
        %v2219 = vlaneseq
        %v2220 = vshrl.u32 %v2219, 7
        %v2221 = vsub.s32 0, %v2220
        %v2222 = vrot.slane %v2218, %v2221
        %2224 = vrot.lane.b32.xlu0 %v2222, 18
        %v2225 = vpop.permute.xlu0 %2224
        %v2227 = vmul.f32 %v2217, %v2225
        %2229 = vrot.lane.b32.xlu0 %v2227, 110
        %v2230 = vpop.permute.xlu0 %2229
        %2232 = vst.msk [vmem:[#allocation7 + $0x40] sm:$0xff] %vm2133, %v2230
        %v2233 = vld [vmem:[%s10] sm:$0xf]
        %v2234 = vld [vmem:[#allocation7] sm:$0xff]
        %v2235 = vld [vmem:[#allocation7 + $0x8] sm:$0xff]
        %v2236 = vld [vmem:[#allocation7 + $0x10] sm:$0xff]
        %v2237 = vld [vmem:[#allocation7 + $0x18] sm:$0xff]
        %v2238 = vld [vmem:[#allocation7 + $0x20] sm:$0xff]
        %v2239 = vld [vmem:[#allocation7 + $0x28] sm:$0xff]
        %v2240 = vld [vmem:[#allocation7 + $0x30] sm:$0xff]
        %v2241 = vld [vmem:[#allocation7 + $0x38] sm:$0xff]
        %v2242 = vld [vmem:[#allocation7 + $0x40] sm:$0xff]
        %v2243 = vpack.c.bf16 %v2235, %v2234
        %v2244 = vpack.c.bf16 %v2237, %v2236
        %v2245 = vpack.c.bf16 %v2239, %v2238
        %v2246 = vpack.c.bf16 %v2241, %v2240
        %v2247 = vpack.c.bf16 %v2242, %v2242
        %v2248 = vld [vmem:[%s11] sm:$0xff]
        %2250 = vset.pattern.permute.xlu0 0
        %2251 = vperm.xlu0 %2250, %v2248
        %v2252 = vpop.permute.xlu0 %2251
        %v2255 = vsel %vm1099, %v2233, 0
        %v2258 = vsel %vm1103, %v2247, 0
        %2260 = vmatprep.subr.bf16.mxu0 0
        %2261 = vmatpush1.bf16.msra.mxu0 %v2243
        %2262 = vmatprep.subr.bf16.mxu0 0
        %2263 = vmatpush1.bf16.msra.mxu0 %v2244
        %2264 = vmatprep.subr.bf16.mxu0 0
        %2265 = vmatpush1.bf16.msra.mxu0 %v2245
        %2266 = vmatprep.subr.bf16.mxu0 0
        %2267 = vmatpush1.bf16.msra.mxu0 %v2246
        %2268 = vmatprep.subr.bf16.mxu0 0
        %2269 = vmatpush1.bf16.msra.mxu0 %v2258
        %2270 = vmatprep.subr.bf16.mxu0 0
        %2271 = vmatpush1.bf16.msra.mxu0 0
        %2272 = vmatprep.subr.bf16.mxu0 0
        %2273 = vmatpush1.bf16.msra.mxu0 0
        %2274 = vmatprep.subr.bf16.mxu0 0
        %2275 = vmatpush1.bf16.msra.mxu0 0
        %2276 = vmatprep.subr.bf16.mxu0 0
        %2277 = vmatpush1.bf16.msra.mxu0 0
        %2278 = vmatprep.subr.bf16.mxu0 0
        %2279 = vmatpush1.bf16.msra.mxu0 0
        %2280 = vmatprep.subr.bf16.mxu0 0
        %2281 = vmatpush1.bf16.msra.mxu0 0
        %2282 = vmatprep.subr.bf16.mxu0 0
        %2283 = vmatpush1.bf16.msra.mxu0 0
        %2284 = vmatprep.subr.bf16.mxu0 0
        %2285 = vmatpush1.bf16.msra.mxu0 0
        %2286 = vmatprep.subr.bf16.mxu0 0
        %2287 = vmatpush1.bf16.msra.mxu0 0
        %2288 = vmatprep.subr.bf16.mxu0 0
        %2289 = vmatpush1.bf16.msra.mxu0 0
        %2290 = vmatprep.subr.bf16.mxu0 0
        %2291 = vmatpush1.bf16.msra.mxu0 0
        %2292 = vmatprep.mubr.bf16.mxu0 0
        %2293 = vmatmul.mubr.bf16.gmra.mrb[0].mxu0 %v2255
        %v2294 = vpop.f32.mrb[0].mxu0
        %v2295 = vadd.f32 %v2252, %v2294
        %v2296 = vpop.f32.mrb[0].mxu0
        %v2297 = vpop.f32.mrb[0].mxu0
        %v2298 = vpop.f32.mrb[0].mxu0
        %2299 = vdwg.mxu0
        %vm2300 = vcmp.ge.f32.partialorder %v2295, 0.0
        %v2301 = vmul.f32 %v2295, 0.01
        %v2302 = vsel %vm2300, %v2295, %v2301
        %v2303 = vadd.f32 %v2113, %v2302
        %2304 = vst.msk [vmem:[%s406] sm:$0xff] %vm2133, %v2303
        %s2305 = sand.u32 %s291, 1
        %s2306 = scalar_lea.sflag [#allocation9], %s2305
        %s2307 = sand.u32 %s291, 1
        %s2308 = smul.addr %s2307, 8
        %s2309 = scalar_lea.vmem [#allocation8], %s2308
        // Predicated region
        $region69: #{tpu_custom_call.1} parent=67 // pred_check
          %p2310 = pneg %p301
        $region70: #{tpu_custom_call.1} parent=67 // pred_check_branch
          %2312 = sbr.rel (%p2310) target = $region72
        $region71: #{tpu_custom_call.1} parent=67 // pred_region
          %s2314 = ssub.s32 128, 128
          %2315 = vsyncadd %s2306, %s2314
          %s2316 = smul.addr %s26, 128
          %s2317 = scalar_lea.hbm %s12, %s2316
          %s2319 = sshll.u32 %s2309, 4
          %s2320 = int_to_ptr.vmem [resolvable:$true] %s2319
          %2322 = dma.vmem_to_hbm [thread:$0]  %s2320, 128, %s2317, %s2306
        $region72: #{tpu_custom_call.1} parent=67 // pred_fallthru
          _
      $region68: #{tpu_custom_call.1} parent=5 // pred_fallthru
        _
      %p2323 = scmp.le.s32.totalorder 2, %s21
      // Predicated region
      $region73: #{tpu_custom_call.1} parent=5 // pred_check
        %p2324 = pneg %p2323
      $region74: #{tpu_custom_call.1} parent=5 // pred_check_branch
        %2326 = sbr.rel (%p2324) target = $region76
      $region75: #{tpu_custom_call.1} parent=5 // pred_region
        %s2327 = ssub.s32 %s21, 2
        // Predicated region
        $region77: #{tpu_custom_call.1} parent=75 // pred_check
          %p2328 = pneg %p307
        $region78: #{tpu_custom_call.1} parent=75 // pred_check_branch
          %2330 = sbr.rel (%p2328) target = $region80
        $region79: #{tpu_custom_call.1} parent=75 // pred_region
          %s2331 = sand.u32 %s292, 1
          %s2332 = scalar_lea.sflag [#allocation9], %s2331
          %s2333 = sand.u32 %s292, 1
          %s2334 = smul.addr %s2333, 8
          %s2335 = scalar_lea.vmem [#allocation8], %s2334
          %2336 = dma.done %s2332, 128
        $region80: #{tpu_custom_call.1} parent=75 // pred_fallthru
          _
      $region76: #{tpu_custom_call.1} parent=5 // pred_fallthru
        _
    $region6: #{tpu_custom_call.1} parent=1 // loop_footer
      %s25 = sadd.s32 1, %s21
    $region7: #{tpu_custom_call.1} parent=1 // loop_footer_branch
      %20 = sbr.rel target = $region3
    $region8: #{tpu_custom_call.1} parent=1 // loop_exit
      _
    %2337 = vsyncpa [#allocation9], 1
    %s2338 = scalar_lea.sflag [#allocation9], 1
    %2339 = vsyncpa %s2338, 1

</llo_original>
